<compile_context>
chip_gen: v5e
topology: v5e:2x2
jax: 0.10.0
libtpu: 0.0.40
codegen_flags: <defaults>
</compile_context>

<pallas_src>
import functools

import jax
import jax.numpy as jnp
from jax.experimental import pallas as pl
from jax.experimental.pallas import tpu as pltpu


def encoder_layer_kernel(x_ref, mask_ref,
                         ln1w_ref, ln1b_ref,
                         wq_ref, bq_ref, wk_ref, bk_ref, wv_ref, bv_ref,
                         wo_ref, bo_ref,
                         ln2w_ref, ln2b_ref,
                         w1_ref, b1_ref, w2_ref, b2_ref,
                         out_ref,
                         *, n_head):
    bt, S, D = x_ref.shape
    N = bt * S
    hd = D // n_head
    eps = 1e-5

    def layer_norm(v, w, b):
        mu = jnp.mean(v, axis=-1, keepdims=True)
        var = jnp.mean((v - mu) ** 2, axis=-1, keepdims=True)
        return (v - mu) * jax.lax.rsqrt(var + eps) * w + b

    def mm(a_f32, w_ref, b_ref):
        # bf16 x bf16 MXU matmul with f32 accumulation, f32 bias add.
        return jnp.dot(a_f32.astype(jnp.bfloat16), w_ref[...],
                       preferred_element_type=jnp.float32) + b_ref[0]

    # Flattened slab for the dense matmuls only.
    x = x_ref[...].reshape(N, D)                                     # (N, D) f32

    # Additive key-padding bias built in-kernel from the tiny (bt, 1, S) mask
    # (finite -1e30 -> no NaNs even for fully-padded rows).
    key_bias = jnp.where(mask_ref[...] == 0.0, -1e30, 0.0).astype(jnp.float32)  # (bt,1,S)

    # ---- self-attention sublayer (pre-LN) ----
    residual = x
    xn = layer_norm(x, ln1w_ref[0], ln1b_ref[0])

    q = mm(xn, wq_ref, bq_ref)        # scaling folded into wq/bq on the host
    k = mm(xn, wk_ref, bk_ref)
    v = mm(xn, wv_ref, bv_ref)

    q3 = q.reshape(bt, S, D).astype(jnp.bfloat16)
    k3 = k.reshape(bt, S, D).astype(jnp.bfloat16)
    v3 = v.reshape(bt, S, D).astype(jnp.bfloat16)

    # Per-head attention as rank-3 (leading batch) MXU einsums; no cross-batch
    # scores, no same-batch mask, deferred softmax normalization.
    ctx_heads = []
    for h in range(n_head):
        lo, hi = h * hd, (h + 1) * hd
        qh = q3[:, :, lo:hi]
        kh = k3[:, :, lo:hi]
        vh = v3[:, :, lo:hi]
        s = jnp.einsum('bqe,bke->bqk', qh, kh,
                       preferred_element_type=jnp.float32)           # (bt, S, S)
        s = s + key_bias                                             # broadcast over queries
        m = jnp.max(s, axis=-1, keepdims=True)
        e = jnp.exp(s - m)                                           # f32 (v5e-safe)
        denom = jnp.sum(e, axis=-1, keepdims=True)                   # (bt, S, 1)
        ctx = jnp.einsum('bqk,bke->bqe', e.astype(jnp.bfloat16), vh,
                         preferred_element_type=jnp.float32)         # (bt, S, hd)
        # Deferred normalization: divide after P@V (N*hd instead of N*N mults).
        ctx_heads.append(ctx * pl.reciprocal(denom, approx=True))

    attn = jnp.concatenate(ctx_heads, axis=-1).reshape(N, D)         # (N, D)
    attn = mm(attn, wo_ref, bo_ref)

    x1 = residual + attn

    # ---- feed-forward sublayer (pre-LN) ----
    residual = x1
    xn2 = layer_norm(x1, ln2w_ref[0], ln2b_ref[0])
    h1 = jnp.maximum(mm(xn2, w1_ref, b1_ref), 0.0)
    ff = mm(h1, w2_ref, b2_ref)      # h1 is cast to bf16 inside mm()

    out_ref[...] = (residual + ff).reshape(bt, S, D)


def transformer_encoder_layer(x, mask, params, n_head, batch_tile=1):
    """batch_tile: choose so bt*S is a multiple of 256 (v6e/v7x) / 128 (v5e) and
    keep nb = B // bt >= 2 so the parallel grid axis can shard over v7x's 2 TCs."""
    B, S, D = x.shape
    dim_ff = params["w1"].shape[1]
    bt = batch_tile
    assert B % bt == 0 and D % n_head == 0
    nb = B // bt

    # Tiny (B, 1, S) mask block; the additive bias is built inside the kernel.
    mask3 = mask.astype(jnp.float32).reshape(B, 1, S)

    # Fold the 1/sqrt(hd) query scaling into wq / bq on the host.
    scaling = (D // n_head) ** -0.5
    wq_scaled = params["wq"] * scaling
    bq_scaled = params["bq"] * scaling

    bf16 = lambda a: a.astype(jnp.bfloat16)   # matmul weights -> bf16 (f32 accumulate)

    def const_spec(shape):
        # Constant-index weight block, resident across all grid steps.
        # Single-buffered: the index_map never changes, so double-buffering would
        # only double weight VMEM (matters most under v7x's 64 MiB VMEM).
        return pl.BlockSpec(shape, lambda t, _n=len(shape): (0,) * _n,
                            pipeline_mode=pl.Buffered(1))

    in_specs = [
        pl.BlockSpec((bt, S, D), lambda t: (t, 0, 0)),      # x (batch tile)
        pl.BlockSpec((bt, 1, S), lambda t: (t, 0, 0)),      # key-padding mask
        const_spec((1, D)), const_spec((1, D)),             # ln1 w, b
        const_spec((D, D)), const_spec((1, D)),             # wq, bq (pre-scaled)
        const_spec((D, D)), const_spec((1, D)),             # wk, bk
        const_spec((D, D)), const_spec((1, D)),             # wv, bv
        const_spec((D, D)), const_spec((1, D)),             # wo, bo
        const_spec((1, D)), const_spec((1, D)),             # ln2 w, b
        const_spec((D, dim_ff)), const_spec((1, dim_ff)),   # w1, b1
        const_spec((dim_ff, D)), const_spec((1, D)),        # w2, b2
    ]

    kernel = functools.partial(encoder_layer_kernel, n_head=n_head)

    return pl.pallas_call(
        kernel,
        out_shape=jax.ShapeDtypeStruct((B, S, D), jnp.float32),
        grid=(nb,),
        in_specs=in_specs,
        out_specs=pl.BlockSpec((bt, S, D), lambda t: (t, 0, 0)),
        compiler_params=pltpu.CompilerParams(
            dimension_semantics=("parallel",),
            vmem_limit_bytes=40 * 1024 * 1024,
        ),
    )(
        x, mask3,
        params["ln1_w"], params["ln1_b"],
        bf16(wq_scaled), bq_scaled,
        bf16(params["wk"]), params["bk"],
        bf16(params["wv"]), params["bv"],
        bf16(params["wo"]), params["bo"],
        params["ln2_w"], params["ln2_b"],
        bf16(params["w1"]), params["b1"],
        bf16(params["w2"]), params["b2"],
    )


def reference_forward(x, mask, params, n_head):
    """Pure-JAX (f32) replica of the PyTorch forward (eval mode) for verification."""
    D = x.shape[-1]
    hd = D // n_head
    eps = 1e-5

    def ln(v, w, b):
        mu = jnp.mean(v, axis=-1, keepdims=True)
        var = jnp.mean((v - mu) ** 2, axis=-1, keepdims=True)
        return (v - mu) / jnp.sqrt(var + eps) * w[0] + b[0]

    residual = x
    xn = ln(x, params["ln1_w"], params["ln1_b"])
    q = (xn @ params["wq"] + params["bq"][0]) * (hd ** -0.5)
    k = xn @ params["wk"] + params["bk"][0]
    v = xn @ params["wv"] + params["bv"][0]
    B, S, _ = x.shape
    q = q.reshape(B, S, n_head, hd)
    k = k.reshape(B, S, n_head, hd)
    v = v.reshape(B, S, n_head, hd)
    scores = jnp.einsum("bqnh,bknh->bqkn", q, k)
    scores = jnp.where(mask[:, None, :, None] == 0.0, -1e30, scores)
    p = jax.nn.softmax(scores, axis=2)
    out = jnp.einsum("bqkn,bknh->bqnh", p, v).reshape(B, S, D)
    out = out @ params["wo"] + params["bo"][0]
    x = residual + out
    residual = x
    xn = ln(x, params["ln2_w"], params["ln2_b"])
    h = jnp.maximum(xn @ params["w1"] + params["b1"][0], 0.0)
    h = h @ params["w2"] + params["b2"][0]
    return residual + h


if __name__ == "__main__":
    # Small shapes consistent with the module's forward: batch x src_seq x d_model.
    B, S, D, H, FF = 2, 8, 32, 4, 64

    key = jax.random.PRNGKey(0)
    keys = jax.random.split(key, 12)

    def w(k, shape, scale=0.1):
        return (scale * jax.random.normal(k, shape)).astype(jnp.float32)

    params = {
        "ln1_w": jnp.ones((1, D), jnp.float32),
        "ln1_b": jnp.zeros((1, D), jnp.float32),
        "wq": w(keys[0], (D, D)), "bq": w(keys[1], (1, D), 0.02),
        "wk": w(keys[2], (D, D)), "bk": w(keys[3], (1, D), 0.02),
        "wv": w(keys[4], (D, D)), "bv": w(keys[5], (1, D), 0.02),
        "wo": w(keys[6], (D, D)), "bo": w(keys[7], (1, D), 0.02),
        "ln2_w": jnp.ones((1, D), jnp.float32),
        "ln2_b": jnp.zeros((1, D), jnp.float32),
        "w1": w(keys[8], (D, FF)), "b1": w(keys[9], (1, FF), 0.02),
        "w2": w(keys[10], (FF, D)), "b2": w(keys[11], (1, D), 0.02),
    }

    xkey, _ = jax.random.split(jax.random.PRNGKey(42))
    x = jax.random.normal(xkey, (B, S, D), jnp.float32)
    # mask: 0 == padding; keep first few tokens valid per batch row.
    mask = jnp.stack([
        jnp.concatenate([jnp.ones((6,)), jnp.zeros((2,))]),
        jnp.concatenate([jnp.ones((8,)), jnp.zeros((0,))]),
    ]).astype(jnp.float32)

    out = transformer_encoder_layer(x, mask, params, n_head=H)
    out = jax.block_until_ready(out)

    ref = reference_forward(x, mask, params, n_head=H)
    assert out.shape == (B, S, D)
    err = float(jnp.max(jnp.abs(out - ref)))
    # bf16 matmuls (f32 accumulate) + approx reciprocal vs the f32 reference.
    assert err < 5e-2, f"mismatch vs JAX reference: max abs err {err}"

    print("KERNEL_OK")
</pallas_src>

<mosaic_0001>
module attributes {stable_mosaic.version = 11 : i64} {
  func.func @encoder_layer_kernel(%arg0: i32, %arg1: memref<1x8x32xf32, #tpu.memory_space<vmem>>, %arg2: memref<1x1x8xf32, #tpu.memory_space<vmem>>, %arg3: memref<1x32xf32, #tpu.memory_space<vmem>>, %arg4: memref<1x32xf32, #tpu.memory_space<vmem>>, %arg5: memref<32x32xbf16, #tpu.memory_space<vmem>>, %arg6: memref<1x32xf32, #tpu.memory_space<vmem>>, %arg7: memref<32x32xbf16, #tpu.memory_space<vmem>>, %arg8: memref<1x32xf32, #tpu.memory_space<vmem>>, %arg9: memref<32x32xbf16, #tpu.memory_space<vmem>>, %arg10: memref<1x32xf32, #tpu.memory_space<vmem>>, %arg11: memref<32x32xbf16, #tpu.memory_space<vmem>>, %arg12: memref<1x32xf32, #tpu.memory_space<vmem>>, %arg13: memref<1x32xf32, #tpu.memory_space<vmem>>, %arg14: memref<1x32xf32, #tpu.memory_space<vmem>>, %arg15: memref<32x64xbf16, #tpu.memory_space<vmem>>, %arg16: memref<1x64xf32, #tpu.memory_space<vmem>>, %arg17: memref<64x32xbf16, #tpu.memory_space<vmem>>, %arg18: memref<1x32xf32, #tpu.memory_space<vmem>>, %arg19: memref<1x8x32xf32, #tpu.memory_space<vmem>>) attributes {dimension_semantics = [#tpu.dimension_semantics<parallel>], iteration_bounds = array<i64: 2>, scalar_prefetch = 0 : i64, scratch_operands = 0 : i64, tpu.core_type = #tpu.core_type<tc>, window_params = [{transform_indices = @transform_0, window_bounds = array<i64: 1, 8, 32>}, {transform_indices = @transform_1, window_bounds = array<i64: 1, 1, 8>}, {pipeline_mode = #tpu.pipeline_mode<synchronous>, transform_indices = @transform_2, window_bounds = array<i64: 1, 32>}, {pipeline_mode = #tpu.pipeline_mode<synchronous>, transform_indices = @transform_3, window_bounds = array<i64: 1, 32>}, {pipeline_mode = #tpu.pipeline_mode<synchronous>, transform_indices = @transform_4, window_bounds = array<i64: 32, 32>}, {pipeline_mode = #tpu.pipeline_mode<synchronous>, transform_indices = @transform_5, window_bounds = array<i64: 1, 32>}, {pipeline_mode = #tpu.pipeline_mode<synchronous>, transform_indices = @transform_6, window_bounds = array<i64: 32, 32>}, {pipeline_mode = #tpu.pipeline_mode<synchronous>, transform_indices = @transform_7, window_bounds = array<i64: 1, 32>}, {pipeline_mode = #tpu.pipeline_mode<synchronous>, transform_indices = @transform_8, window_bounds = array<i64: 32, 32>}, {pipeline_mode = #tpu.pipeline_mode<synchronous>, transform_indices = @transform_9, window_bounds = array<i64: 1, 32>}, {pipeline_mode = #tpu.pipeline_mode<synchronous>, transform_indices = @transform_10, window_bounds = array<i64: 32, 32>}, {pipeline_mode = #tpu.pipeline_mode<synchronous>, transform_indices = @transform_11, window_bounds = array<i64: 1, 32>}, {pipeline_mode = #tpu.pipeline_mode<synchronous>, transform_indices = @transform_12, window_bounds = array<i64: 1, 32>}, {pipeline_mode = #tpu.pipeline_mode<synchronous>, transform_indices = @transform_13, window_bounds = array<i64: 1, 32>}, {pipeline_mode = #tpu.pipeline_mode<synchronous>, transform_indices = @transform_14, window_bounds = array<i64: 32, 64>}, {pipeline_mode = #tpu.pipeline_mode<synchronous>, transform_indices = @transform_15, window_bounds = array<i64: 1, 64>}, {pipeline_mode = #tpu.pipeline_mode<synchronous>, transform_indices = @transform_16, window_bounds = array<i64: 64, 32>}, {pipeline_mode = #tpu.pipeline_mode<synchronous>, transform_indices = @transform_17, window_bounds = array<i64: 1, 32>}, {transform_indices = @transform_18, window_bounds = array<i64: 1, 8, 32>}]} {
    %c0 = arith.constant 0 : index
    %c0_0 = arith.constant 0 : index
    %c0_1 = arith.constant 0 : index
    %0 = vector.load %arg1[%c0, %c0_0, %c0_1] : memref<1x8x32xf32, #tpu.memory_space<vmem>>, vector<1x8x32xf32>
    %1 = vector.shape_cast %0 : vector<1x8x32xf32> to vector<8x32xf32>
    %c0_2 = arith.constant 0 : index
    %c0_3 = arith.constant 0 : index
    %c0_4 = arith.constant 0 : index
    %2 = vector.load %arg2[%c0_2, %c0_3, %c0_4] : memref<1x1x8xf32, #tpu.memory_space<vmem>>, vector<1x1x8xf32>
    %cst = arith.constant 0.000000e+00 : f32
    %3 = vector.broadcast %cst : f32 to vector<1x1x8xf32>
    %4 = arith.cmpf oeq, %2, %3 : vector<1x1x8xf32>
    %cst_5 = arith.constant -1.000000e+30 : f32
    %cst_6 = arith.constant 0.000000e+00 : f32
    %5 = vector.broadcast %cst_5 : f32 to vector<1x1x8xf32>
    %6 = vector.broadcast %cst_6 : f32 to vector<1x1x8xf32>
    %7 = arith.select %4, %5, %6 : vector<1x1x8xi1>, vector<1x1x8xf32>
    %c0_7 = arith.constant 0 : index
    %c0_8 = arith.constant 0 : index
    %8 = vector.load %arg3[%c0_7, %c0_8] : memref<1x32xf32, #tpu.memory_space<vmem>>, vector<1x32xf32>
    %9 = vector.shape_cast %8 : vector<1x32xf32> to vector<32xf32>
    %c0_9 = arith.constant 0 : index
    %c0_10 = arith.constant 0 : index
    %10 = vector.load %arg4[%c0_9, %c0_10] : memref<1x32xf32, #tpu.memory_space<vmem>>, vector<1x32xf32>
    %11 = vector.shape_cast %10 : vector<1x32xf32> to vector<32xf32>
    %cst_11 = arith.constant dense<0.000000e+00> : vector<8xf32>
    %12 = vector.multi_reduction <add>, %1, %cst_11 [1] : vector<8x32xf32> to vector<8xf32>
    %13 = vector.shape_cast %12 : vector<8xf32> to vector<8x1xf32>
    %cst_12 = arith.constant 3.200000e+01 : f32
    %14 = vector.broadcast %cst_12 : f32 to vector<8x1xf32>
    %15 = arith.divf %13, %14 : vector<8x1xf32>
    %16 = vector.broadcast %15 : vector<8x1xf32> to vector<8x32xf32>
    %17 = arith.subf %1, %16 : vector<8x32xf32>
    %18 = arith.mulf %17, %17 : vector<8x32xf32>
    %cst_13 = arith.constant dense<0.000000e+00> : vector<8xf32>
    %19 = vector.multi_reduction <add>, %18, %cst_13 [1] : vector<8x32xf32> to vector<8xf32>
    %20 = vector.shape_cast %19 : vector<8xf32> to vector<8x1xf32>
    %cst_14 = arith.constant 3.200000e+01 : f32
    %21 = vector.broadcast %cst_14 : f32 to vector<8x1xf32>
    %22 = arith.divf %20, %21 : vector<8x1xf32>
    %23 = vector.broadcast %15 : vector<8x1xf32> to vector<8x32xf32>
    %24 = arith.subf %1, %23 : vector<8x32xf32>
    %cst_15 = arith.constant 9.99999974E-6 : f32
    %25 = vector.broadcast %cst_15 : f32 to vector<8x1xf32>
    %26 = arith.addf %22, %25 : vector<8x1xf32>
    %27 = math.rsqrt %26 : vector<8x1xf32>
    %28 = vector.broadcast %27 : vector<8x1xf32> to vector<8x32xf32>
    %29 = arith.mulf %24, %28 : vector<8x32xf32>
    %30 = vector.shape_cast %9 : vector<32xf32> to vector<1x32xf32>
    %31 = vector.broadcast %30 : vector<1x32xf32> to vector<8x32xf32>
    %32 = arith.mulf %29, %31 : vector<8x32xf32>
    %33 = vector.shape_cast %11 : vector<32xf32> to vector<1x32xf32>
    %34 = vector.broadcast %33 : vector<1x32xf32> to vector<8x32xf32>
    %35 = arith.addf %32, %34 : vector<8x32xf32>
    %36 = arith.truncf %35 : vector<8x32xf32> to vector<8x32xbf16>
    %c0_16 = arith.constant 0 : index
    %c0_17 = arith.constant 0 : index
    %37 = vector.load %arg5[%c0_16, %c0_17] : memref<32x32xbf16, #tpu.memory_space<vmem>>, vector<32x32xbf16>
    %cst_18 = arith.constant dense<0.000000e+00> : vector<8x32xf32>
    %38 = tpu.matmul %36, %37, %cst_18 {dimension_numbers = #tpu.dot_dimension_numbers<[1], [0], [0], [1], [0, 0, 1, 1], [], []>} : vector<8x32xbf16>, vector<32x32xbf16>, vector<8x32xf32> -> vector<8x32xf32>
    %c0_19 = arith.constant 0 : index
    %c0_20 = arith.constant 0 : index
    %39 = vector.load %arg6[%c0_19, %c0_20] : memref<1x32xf32, #tpu.memory_space<vmem>>, vector<1x32xf32>
    %40 = vector.shape_cast %39 : vector<1x32xf32> to vector<32xf32>
    %41 = vector.shape_cast %40 : vector<32xf32> to vector<1x32xf32>
    %42 = vector.broadcast %41 : vector<1x32xf32> to vector<8x32xf32>
    %43 = arith.addf %38, %42 : vector<8x32xf32>
    %44 = arith.truncf %35 : vector<8x32xf32> to vector<8x32xbf16>
    %c0_21 = arith.constant 0 : index
    %c0_22 = arith.constant 0 : index
    %45 = vector.load %arg7[%c0_21, %c0_22] : memref<32x32xbf16, #tpu.memory_space<vmem>>, vector<32x32xbf16>
    %cst_23 = arith.constant dense<0.000000e+00> : vector<8x32xf32>
    %46 = tpu.matmul %44, %45, %cst_23 {dimension_numbers = #tpu.dot_dimension_numbers<[1], [0], [0], [1], [0, 0, 1, 1], [], []>} : vector<8x32xbf16>, vector<32x32xbf16>, vector<8x32xf32> -> vector<8x32xf32>
    %c0_24 = arith.constant 0 : index
    %c0_25 = arith.constant 0 : index
    %47 = vector.load %arg8[%c0_24, %c0_25] : memref<1x32xf32, #tpu.memory_space<vmem>>, vector<1x32xf32>
    %48 = vector.shape_cast %47 : vector<1x32xf32> to vector<32xf32>
    %49 = vector.shape_cast %48 : vector<32xf32> to vector<1x32xf32>
    %50 = vector.broadcast %49 : vector<1x32xf32> to vector<8x32xf32>
    %51 = arith.addf %46, %50 : vector<8x32xf32>
    %52 = arith.truncf %35 : vector<8x32xf32> to vector<8x32xbf16>
    %c0_26 = arith.constant 0 : index
    %c0_27 = arith.constant 0 : index
    %53 = vector.load %arg9[%c0_26, %c0_27] : memref<32x32xbf16, #tpu.memory_space<vmem>>, vector<32x32xbf16>
    %cst_28 = arith.constant dense<0.000000e+00> : vector<8x32xf32>
    %54 = tpu.matmul %52, %53, %cst_28 {dimension_numbers = #tpu.dot_dimension_numbers<[1], [0], [0], [1], [0, 0, 1, 1], [], []>} : vector<8x32xbf16>, vector<32x32xbf16>, vector<8x32xf32> -> vector<8x32xf32>
    %c0_29 = arith.constant 0 : index
    %c0_30 = arith.constant 0 : index
    %55 = vector.load %arg10[%c0_29, %c0_30] : memref<1x32xf32, #tpu.memory_space<vmem>>, vector<1x32xf32>
    %56 = vector.shape_cast %55 : vector<1x32xf32> to vector<32xf32>
    %57 = vector.shape_cast %56 : vector<32xf32> to vector<1x32xf32>
    %58 = vector.broadcast %57 : vector<1x32xf32> to vector<8x32xf32>
    %59 = arith.addf %54, %58 : vector<8x32xf32>
    %60 = vector.shape_cast %43 : vector<8x32xf32> to vector<1x8x32xf32>
    %61 = arith.truncf %60 : vector<1x8x32xf32> to vector<1x8x32xbf16>
    %62 = vector.shape_cast %51 : vector<8x32xf32> to vector<1x8x32xf32>
    %63 = arith.truncf %62 : vector<1x8x32xf32> to vector<1x8x32xbf16>
    %64 = vector.shape_cast %59 : vector<8x32xf32> to vector<1x8x32xf32>
    %65 = arith.truncf %64 : vector<1x8x32xf32> to vector<1x8x32xbf16>
    %66 = vector.extract_strided_slice %61 {offsets = [0, 0, 0], sizes = [1, 8, 8], strides = [1, 1, 1]} : vector<1x8x32xbf16> to vector<1x8x8xbf16>
    %67 = vector.extract_strided_slice %63 {offsets = [0, 0, 0], sizes = [1, 8, 8], strides = [1, 1, 1]} : vector<1x8x32xbf16> to vector<1x8x8xbf16>
    %68 = vector.extract_strided_slice %65 {offsets = [0, 0, 0], sizes = [1, 8, 8], strides = [1, 1, 1]} : vector<1x8x32xbf16> to vector<1x8x8xbf16>
    "tpu.trace_start"() <{level = 10 : i32, message = "bqe,bke->bqk"}> : () -> ()
    %cst_31 = arith.constant dense<0.000000e+00> : vector<1x8x8xf32>
    %69 = tpu.matmul %66, %67, %cst_31 {dimension_numbers = #tpu.dot_dimension_numbers<[2], [2], [1], [1], [0, 0, 0, 1, 1, 1], [0], [0]>} : vector<1x8x8xbf16>, vector<1x8x8xbf16>, vector<1x8x8xf32> -> vector<1x8x8xf32>
    "tpu.trace_stop"() : () -> ()
    %70 = vector.broadcast %7 : vector<1x1x8xf32> to vector<1x8x8xf32>
    %71 = arith.addf %69, %70 : vector<1x8x8xf32>
    %cst_32 = arith.constant dense<0xFF800000> : vector<1x8xf32>
    %72 = vector.multi_reduction <maximumf>, %71, %cst_32 [2] : vector<1x8x8xf32> to vector<1x8xf32>
    %73 = vector.shape_cast %72 : vector<1x8xf32> to vector<1x8x1xf32>
    %74 = vector.broadcast %73 : vector<1x8x1xf32> to vector<1x8x8xf32>
    %75 = arith.subf %71, %74 : vector<1x8x8xf32>
    %76 = math.exp %75 : vector<1x8x8xf32>
    %cst_33 = arith.constant dense<0.000000e+00> : vector<1x8xf32>
    %77 = vector.multi_reduction <add>, %76, %cst_33 [2] : vector<1x8x8xf32> to vector<1x8xf32>
    %78 = vector.shape_cast %77 : vector<1x8xf32> to vector<1x8x1xf32>
    %79 = arith.truncf %76 : vector<1x8x8xf32> to vector<1x8x8xbf16>
    "tpu.trace_start"() <{level = 10 : i32, message = "bqk,bke->bqe"}> : () -> ()
    %cst_34 = arith.constant dense<0.000000e+00> : vector<1x8x8xf32>
    %80 = tpu.matmul %79, %68, %cst_34 {dimension_numbers = #tpu.dot_dimension_numbers<[2], [1], [1], [2], [0, 0, 0, 1, 1, 2], [0], [0]>} : vector<1x8x8xbf16>, vector<1x8x8xbf16>, vector<1x8x8xf32> -> vector<1x8x8xf32>
    "tpu.trace_stop"() : () -> ()
    %81 = tpu.reciprocal %78 {approx = true} : vector<1x8x1xf32> -> vector<1x8x1xf32>
    %82 = vector.broadcast %81 : vector<1x8x1xf32> to vector<1x8x8xf32>
    %83 = arith.mulf %80, %82 : vector<1x8x8xf32>
    %84 = vector.extract_strided_slice %61 {offsets = [0, 0, 8], sizes = [1, 8, 8], strides = [1, 1, 1]} : vector<1x8x32xbf16> to vector<1x8x8xbf16>
    %85 = vector.extract_strided_slice %63 {offsets = [0, 0, 8], sizes = [1, 8, 8], strides = [1, 1, 1]} : vector<1x8x32xbf16> to vector<1x8x8xbf16>
    %86 = vector.extract_strided_slice %65 {offsets = [0, 0, 8], sizes = [1, 8, 8], strides = [1, 1, 1]} : vector<1x8x32xbf16> to vector<1x8x8xbf16>
    "tpu.trace_start"() <{level = 10 : i32, message = "bqe,bke->bqk"}> : () -> ()
    %cst_35 = arith.constant dense<0.000000e+00> : vector<1x8x8xf32>
    %87 = tpu.matmul %84, %85, %cst_35 {dimension_numbers = #tpu.dot_dimension_numbers<[2], [2], [1], [1], [0, 0, 0, 1, 1, 1], [0], [0]>} : vector<1x8x8xbf16>, vector<1x8x8xbf16>, vector<1x8x8xf32> -> vector<1x8x8xf32>
    "tpu.trace_stop"() : () -> ()
    %88 = vector.broadcast %7 : vector<1x1x8xf32> to vector<1x8x8xf32>
    %89 = arith.addf %87, %88 : vector<1x8x8xf32>
    %cst_36 = arith.constant dense<0xFF800000> : vector<1x8xf32>
    %90 = vector.multi_reduction <maximumf>, %89, %cst_36 [2] : vector<1x8x8xf32> to vector<1x8xf32>
    %91 = vector.shape_cast %90 : vector<1x8xf32> to vector<1x8x1xf32>
    %92 = vector.broadcast %91 : vector<1x8x1xf32> to vector<1x8x8xf32>
    %93 = arith.subf %89, %92 : vector<1x8x8xf32>
    %94 = math.exp %93 : vector<1x8x8xf32>
    %cst_37 = arith.constant dense<0.000000e+00> : vector<1x8xf32>
    %95 = vector.multi_reduction <add>, %94, %cst_37 [2] : vector<1x8x8xf32> to vector<1x8xf32>
    %96 = vector.shape_cast %95 : vector<1x8xf32> to vector<1x8x1xf32>
    %97 = arith.truncf %94 : vector<1x8x8xf32> to vector<1x8x8xbf16>
    "tpu.trace_start"() <{level = 10 : i32, message = "bqk,bke->bqe"}> : () -> ()
    %cst_38 = arith.constant dense<0.000000e+00> : vector<1x8x8xf32>
    %98 = tpu.matmul %97, %86, %cst_38 {dimension_numbers = #tpu.dot_dimension_numbers<[2], [1], [1], [2], [0, 0, 0, 1, 1, 2], [0], [0]>} : vector<1x8x8xbf16>, vector<1x8x8xbf16>, vector<1x8x8xf32> -> vector<1x8x8xf32>
    "tpu.trace_stop"() : () -> ()
    %99 = tpu.reciprocal %96 {approx = true} : vector<1x8x1xf32> -> vector<1x8x1xf32>
    %100 = vector.broadcast %99 : vector<1x8x1xf32> to vector<1x8x8xf32>
    %101 = arith.mulf %98, %100 : vector<1x8x8xf32>
    %102 = vector.extract_strided_slice %61 {offsets = [0, 0, 16], sizes = [1, 8, 8], strides = [1, 1, 1]} : vector<1x8x32xbf16> to vector<1x8x8xbf16>
    %103 = vector.extract_strided_slice %63 {offsets = [0, 0, 16], sizes = [1, 8, 8], strides = [1, 1, 1]} : vector<1x8x32xbf16> to vector<1x8x8xbf16>
    %104 = vector.extract_strided_slice %65 {offsets = [0, 0, 16], sizes = [1, 8, 8], strides = [1, 1, 1]} : vector<1x8x32xbf16> to vector<1x8x8xbf16>
    "tpu.trace_start"() <{level = 10 : i32, message = "bqe,bke->bqk"}> : () -> ()
    %cst_39 = arith.constant dense<0.000000e+00> : vector<1x8x8xf32>
    %105 = tpu.matmul %102, %103, %cst_39 {dimension_numbers = #tpu.dot_dimension_numbers<[2], [2], [1], [1], [0, 0, 0, 1, 1, 1], [0], [0]>} : vector<1x8x8xbf16>, vector<1x8x8xbf16>, vector<1x8x8xf32> -> vector<1x8x8xf32>
    "tpu.trace_stop"() : () -> ()
    %106 = vector.broadcast %7 : vector<1x1x8xf32> to vector<1x8x8xf32>
    %107 = arith.addf %105, %106 : vector<1x8x8xf32>
    %cst_40 = arith.constant dense<0xFF800000> : vector<1x8xf32>
    %108 = vector.multi_reduction <maximumf>, %107, %cst_40 [2] : vector<1x8x8xf32> to vector<1x8xf32>
    %109 = vector.shape_cast %108 : vector<1x8xf32> to vector<1x8x1xf32>
    %110 = vector.broadcast %109 : vector<1x8x1xf32> to vector<1x8x8xf32>
    %111 = arith.subf %107, %110 : vector<1x8x8xf32>
    %112 = math.exp %111 : vector<1x8x8xf32>
    %cst_41 = arith.constant dense<0.000000e+00> : vector<1x8xf32>
    %113 = vector.multi_reduction <add>, %112, %cst_41 [2] : vector<1x8x8xf32> to vector<1x8xf32>
    %114 = vector.shape_cast %113 : vector<1x8xf32> to vector<1x8x1xf32>
    %115 = arith.truncf %112 : vector<1x8x8xf32> to vector<1x8x8xbf16>
    "tpu.trace_start"() <{level = 10 : i32, message = "bqk,bke->bqe"}> : () -> ()
    %cst_42 = arith.constant dense<0.000000e+00> : vector<1x8x8xf32>
    %116 = tpu.matmul %115, %104, %cst_42 {dimension_numbers = #tpu.dot_dimension_numbers<[2], [1], [1], [2], [0, 0, 0, 1, 1, 2], [0], [0]>} : vector<1x8x8xbf16>, vector<1x8x8xbf16>, vector<1x8x8xf32> -> vector<1x8x8xf32>
    "tpu.trace_stop"() : () -> ()
    %117 = tpu.reciprocal %114 {approx = true} : vector<1x8x1xf32> -> vector<1x8x1xf32>
    %118 = vector.broadcast %117 : vector<1x8x1xf32> to vector<1x8x8xf32>
    %119 = arith.mulf %116, %118 : vector<1x8x8xf32>
    %120 = vector.extract_strided_slice %61 {offsets = [0, 0, 24], sizes = [1, 8, 8], strides = [1, 1, 1]} : vector<1x8x32xbf16> to vector<1x8x8xbf16>
    %121 = vector.extract_strided_slice %63 {offsets = [0, 0, 24], sizes = [1, 8, 8], strides = [1, 1, 1]} : vector<1x8x32xbf16> to vector<1x8x8xbf16>
    %122 = vector.extract_strided_slice %65 {offsets = [0, 0, 24], sizes = [1, 8, 8], strides = [1, 1, 1]} : vector<1x8x32xbf16> to vector<1x8x8xbf16>
    "tpu.trace_start"() <{level = 10 : i32, message = "bqe,bke->bqk"}> : () -> ()
    %cst_43 = arith.constant dense<0.000000e+00> : vector<1x8x8xf32>
    %123 = tpu.matmul %120, %121, %cst_43 {dimension_numbers = #tpu.dot_dimension_numbers<[2], [2], [1], [1], [0, 0, 0, 1, 1, 1], [0], [0]>} : vector<1x8x8xbf16>, vector<1x8x8xbf16>, vector<1x8x8xf32> -> vector<1x8x8xf32>
    "tpu.trace_stop"() : () -> ()
    %124 = vector.broadcast %7 : vector<1x1x8xf32> to vector<1x8x8xf32>
    %125 = arith.addf %123, %124 : vector<1x8x8xf32>
    %cst_44 = arith.constant dense<0xFF800000> : vector<1x8xf32>
    %126 = vector.multi_reduction <maximumf>, %125, %cst_44 [2] : vector<1x8x8xf32> to vector<1x8xf32>
    %127 = vector.shape_cast %126 : vector<1x8xf32> to vector<1x8x1xf32>
    %128 = vector.broadcast %127 : vector<1x8x1xf32> to vector<1x8x8xf32>
    %129 = arith.subf %125, %128 : vector<1x8x8xf32>
    %130 = math.exp %129 : vector<1x8x8xf32>
    %cst_45 = arith.constant dense<0.000000e+00> : vector<1x8xf32>
    %131 = vector.multi_reduction <add>, %130, %cst_45 [2] : vector<1x8x8xf32> to vector<1x8xf32>
    %132 = vector.shape_cast %131 : vector<1x8xf32> to vector<1x8x1xf32>
    %133 = arith.truncf %130 : vector<1x8x8xf32> to vector<1x8x8xbf16>
    "tpu.trace_start"() <{level = 10 : i32, message = "bqk,bke->bqe"}> : () -> ()
    %cst_46 = arith.constant dense<0.000000e+00> : vector<1x8x8xf32>
    %134 = tpu.matmul %133, %122, %cst_46 {dimension_numbers = #tpu.dot_dimension_numbers<[2], [1], [1], [2], [0, 0, 0, 1, 1, 2], [0], [0]>} : vector<1x8x8xbf16>, vector<1x8x8xbf16>, vector<1x8x8xf32> -> vector<1x8x8xf32>
    "tpu.trace_stop"() : () -> ()
    %135 = tpu.reciprocal %132 {approx = true} : vector<1x8x1xf32> -> vector<1x8x1xf32>
    %136 = vector.broadcast %135 : vector<1x8x1xf32> to vector<1x8x8xf32>
    %137 = arith.mulf %134, %136 : vector<1x8x8xf32>
    %138 = tpu.concatenate %83, %101, %119, %137 in 2 : vector<1x8x8xf32>, vector<1x8x8xf32>, vector<1x8x8xf32>, vector<1x8x8xf32> -> vector<1x8x32xf32>
    %139 = vector.shape_cast %138 : vector<1x8x32xf32> to vector<8x32xf32>
    %140 = arith.truncf %139 : vector<8x32xf32> to vector<8x32xbf16>
    %c0_47 = arith.constant 0 : index
    %c0_48 = arith.constant 0 : index
    %141 = vector.load %arg11[%c0_47, %c0_48] : memref<32x32xbf16, #tpu.memory_space<vmem>>, vector<32x32xbf16>
    %cst_49 = arith.constant dense<0.000000e+00> : vector<8x32xf32>
    %142 = tpu.matmul %140, %141, %cst_49 {dimension_numbers = #tpu.dot_dimension_numbers<[1], [0], [0], [1], [0, 0, 1, 1], [], []>} : vector<8x32xbf16>, vector<32x32xbf16>, vector<8x32xf32> -> vector<8x32xf32>
    %c0_50 = arith.constant 0 : index
    %c0_51 = arith.constant 0 : index
    %143 = vector.load %arg12[%c0_50, %c0_51] : memref<1x32xf32, #tpu.memory_space<vmem>>, vector<1x32xf32>
    %144 = vector.shape_cast %143 : vector<1x32xf32> to vector<32xf32>
    %145 = vector.shape_cast %144 : vector<32xf32> to vector<1x32xf32>
    %146 = vector.broadcast %145 : vector<1x32xf32> to vector<8x32xf32>
    %147 = arith.addf %142, %146 : vector<8x32xf32>
    %148 = arith.addf %1, %147 : vector<8x32xf32>
    %c0_52 = arith.constant 0 : index
    %c0_53 = arith.constant 0 : index
    %149 = vector.load %arg13[%c0_52, %c0_53] : memref<1x32xf32, #tpu.memory_space<vmem>>, vector<1x32xf32>
    %150 = vector.shape_cast %149 : vector<1x32xf32> to vector<32xf32>
    %c0_54 = arith.constant 0 : index
    %c0_55 = arith.constant 0 : index
    %151 = vector.load %arg14[%c0_54, %c0_55] : memref<1x32xf32, #tpu.memory_space<vmem>>, vector<1x32xf32>
    %152 = vector.shape_cast %151 : vector<1x32xf32> to vector<32xf32>
    %cst_56 = arith.constant dense<0.000000e+00> : vector<8xf32>
    %153 = vector.multi_reduction <add>, %148, %cst_56 [1] : vector<8x32xf32> to vector<8xf32>
    %154 = vector.shape_cast %153 : vector<8xf32> to vector<8x1xf32>
    %cst_57 = arith.constant 3.200000e+01 : f32
    %155 = vector.broadcast %cst_57 : f32 to vector<8x1xf32>
    %156 = arith.divf %154, %155 : vector<8x1xf32>
    %157 = vector.broadcast %156 : vector<8x1xf32> to vector<8x32xf32>
    %158 = arith.subf %148, %157 : vector<8x32xf32>
    %159 = arith.mulf %158, %158 : vector<8x32xf32>
    %cst_58 = arith.constant dense<0.000000e+00> : vector<8xf32>
    %160 = vector.multi_reduction <add>, %159, %cst_58 [1] : vector<8x32xf32> to vector<8xf32>
    %161 = vector.shape_cast %160 : vector<8xf32> to vector<8x1xf32>
    %cst_59 = arith.constant 3.200000e+01 : f32
    %162 = vector.broadcast %cst_59 : f32 to vector<8x1xf32>
    %163 = arith.divf %161, %162 : vector<8x1xf32>
    %164 = vector.broadcast %156 : vector<8x1xf32> to vector<8x32xf32>
    %165 = arith.subf %148, %164 : vector<8x32xf32>
    %cst_60 = arith.constant 9.99999974E-6 : f32
    %166 = vector.broadcast %cst_60 : f32 to vector<8x1xf32>
    %167 = arith.addf %163, %166 : vector<8x1xf32>
    %168 = math.rsqrt %167 : vector<8x1xf32>
    %169 = vector.broadcast %168 : vector<8x1xf32> to vector<8x32xf32>
    %170 = arith.mulf %165, %169 : vector<8x32xf32>
    %171 = vector.shape_cast %150 : vector<32xf32> to vector<1x32xf32>
    %172 = vector.broadcast %171 : vector<1x32xf32> to vector<8x32xf32>
    %173 = arith.mulf %170, %172 : vector<8x32xf32>
    %174 = vector.shape_cast %152 : vector<32xf32> to vector<1x32xf32>
    %175 = vector.broadcast %174 : vector<1x32xf32> to vector<8x32xf32>
    %176 = arith.addf %173, %175 : vector<8x32xf32>
    %177 = arith.truncf %176 : vector<8x32xf32> to vector<8x32xbf16>
    %c0_61 = arith.constant 0 : index
    %c0_62 = arith.constant 0 : index
    %178 = vector.load %arg15[%c0_61, %c0_62] : memref<32x64xbf16, #tpu.memory_space<vmem>>, vector<32x64xbf16>
    %cst_63 = arith.constant dense<0.000000e+00> : vector<8x64xf32>
    %179 = tpu.matmul %177, %178, %cst_63 {dimension_numbers = #tpu.dot_dimension_numbers<[1], [0], [0], [1], [0, 0, 1, 1], [], []>} : vector<8x32xbf16>, vector<32x64xbf16>, vector<8x64xf32> -> vector<8x64xf32>
    %c0_64 = arith.constant 0 : index
    %c0_65 = arith.constant 0 : index
    %180 = vector.load %arg16[%c0_64, %c0_65] : memref<1x64xf32, #tpu.memory_space<vmem>>, vector<1x64xf32>
    %181 = vector.shape_cast %180 : vector<1x64xf32> to vector<64xf32>
    %182 = vector.shape_cast %181 : vector<64xf32> to vector<1x64xf32>
    %183 = vector.broadcast %182 : vector<1x64xf32> to vector<8x64xf32>
    %184 = arith.addf %179, %183 : vector<8x64xf32>
    %cst_66 = arith.constant 0.000000e+00 : f32
    %185 = vector.broadcast %cst_66 : f32 to vector<8x64xf32>
    %186 = arith.maximumf %184, %185 : vector<8x64xf32>
    %187 = arith.truncf %186 : vector<8x64xf32> to vector<8x64xbf16>
    %c0_67 = arith.constant 0 : index
    %c0_68 = arith.constant 0 : index
    %188 = vector.load %arg17[%c0_67, %c0_68] : memref<64x32xbf16, #tpu.memory_space<vmem>>, vector<64x32xbf16>
    %cst_69 = arith.constant dense<0.000000e+00> : vector<8x32xf32>
    %189 = tpu.matmul %187, %188, %cst_69 {dimension_numbers = #tpu.dot_dimension_numbers<[1], [0], [0], [1], [0, 0, 1, 1], [], []>} : vector<8x64xbf16>, vector<64x32xbf16>, vector<8x32xf32> -> vector<8x32xf32>
    %c0_70 = arith.constant 0 : index
    %c0_71 = arith.constant 0 : index
    %190 = vector.load %arg18[%c0_70, %c0_71] : memref<1x32xf32, #tpu.memory_space<vmem>>, vector<1x32xf32>
    %191 = vector.shape_cast %190 : vector<1x32xf32> to vector<32xf32>
    %192 = vector.shape_cast %191 : vector<32xf32> to vector<1x32xf32>
    %193 = vector.broadcast %192 : vector<1x32xf32> to vector<8x32xf32>
    %194 = arith.addf %189, %193 : vector<8x32xf32>
    %195 = arith.addf %148, %194 : vector<8x32xf32>
    %196 = vector.shape_cast %195 : vector<8x32xf32> to vector<1x8x32xf32>
    %c0_72 = arith.constant 0 : index
    %c0_73 = arith.constant 0 : index
    %c0_74 = arith.constant 0 : index
    %197 = vector.load %arg19[%c0_72, %c0_73, %c0_74] : memref<1x8x32xf32, #tpu.memory_space<vmem>>, vector<1x8x32xf32>
    tpu.vector_store %arg19[%c0_72, %c0_73, %c0_74], %196 {strides = array<i32>} : memref<1x8x32xf32, #tpu.memory_space<vmem>>, vector<1x8x32xf32>,
    return
  }
  func.func @transform_0(%arg0: i32) -> (i32, i32, i32) {
    %c0_i32 = arith.constant 0 : i32
    %c0_i32_0 = arith.constant 0 : i32
    %c0_i32_1 = arith.constant 0 : i32
    return %arg0, %c0_i32, %c0_i32_0 : i32, i32, i32
  }
  func.func @transform_1(%arg0: i32) -> (i32, i32, i32) {
    %c0_i32 = arith.constant 0 : i32
    %c0_i32_0 = arith.constant 0 : i32
    %c0_i32_1 = arith.constant 0 : i32
    return %arg0, %c0_i32, %c0_i32_0 : i32, i32, i32
  }
  func.func @transform_2(%arg0: i32) -> (i32, i32) {
    %c0_i32 = arith.constant 0 : i32
    %c0_i32_0 = arith.constant 0 : i32
    %c0_i32_1 = arith.constant 0 : i32
    return %c0_i32, %c0_i32_0 : i32, i32
  }
  func.func @transform_3(%arg0: i32) -> (i32, i32) {
    %c0_i32 = arith.constant 0 : i32
    %c0_i32_0 = arith.constant 0 : i32
    %c0_i32_1 = arith.constant 0 : i32
    return %c0_i32, %c0_i32_0 : i32, i32
  }
  func.func @transform_4(%arg0: i32) -> (i32, i32) {
    %c0_i32 = arith.constant 0 : i32
    %c0_i32_0 = arith.constant 0 : i32
    %c0_i32_1 = arith.constant 0 : i32
    return %c0_i32, %c0_i32_0 : i32, i32
  }
  func.func @transform_5(%arg0: i32) -> (i32, i32) {
    %c0_i32 = arith.constant 0 : i32
    %c0_i32_0 = arith.constant 0 : i32
    %c0_i32_1 = arith.constant 0 : i32
    return %c0_i32, %c0_i32_0 : i32, i32
  }
  func.func @transform_6(%arg0: i32) -> (i32, i32) {
    %c0_i32 = arith.constant 0 : i32
    %c0_i32_0 = arith.constant 0 : i32
    %c0_i32_1 = arith.constant 0 : i32
    return %c0_i32, %c0_i32_0 : i32, i32
  }
  func.func @transform_7(%arg0: i32) -> (i32, i32) {
    %c0_i32 = arith.constant 0 : i32
    %c0_i32_0 = arith.constant 0 : i32
    %c0_i32_1 = arith.constant 0 : i32
    return %c0_i32, %c0_i32_0 : i32, i32
  }
  func.func @transform_8(%arg0: i32) -> (i32, i32) {
    %c0_i32 = arith.constant 0 : i32
    %c0_i32_0 = arith.constant 0 : i32
    %c0_i32_1 = arith.constant 0 : i32
    return %c0_i32, %c0_i32_0 : i32, i32
  }
  func.func @transform_9(%arg0: i32) -> (i32, i32) {
    %c0_i32 = arith.constant 0 : i32
    %c0_i32_0 = arith.constant 0 : i32
    %c0_i32_1 = arith.constant 0 : i32
    return %c0_i32, %c0_i32_0 : i32, i32
  }
  func.func @transform_10(%arg0: i32) -> (i32, i32) {
    %c0_i32 = arith.constant 0 : i32
    %c0_i32_0 = arith.constant 0 : i32
    %c0_i32_1 = arith.constant 0 : i32
    return %c0_i32, %c0_i32_0 : i32, i32
  }
  func.func @transform_11(%arg0: i32) -> (i32, i32) {
    %c0_i32 = arith.constant 0 : i32
    %c0_i32_0 = arith.constant 0 : i32
    %c0_i32_1 = arith.constant 0 : i32
    return %c0_i32, %c0_i32_0 : i32, i32
  }
  func.func @transform_12(%arg0: i32) -> (i32, i32) {
    %c0_i32 = arith.constant 0 : i32
    %c0_i32_0 = arith.constant 0 : i32
    %c0_i32_1 = arith.constant 0 : i32
    return %c0_i32, %c0_i32_0 : i32, i32
  }
  func.func @transform_13(%arg0: i32) -> (i32, i32) {
    %c0_i32 = arith.constant 0 : i32
    %c0_i32_0 = arith.constant 0 : i32
    %c0_i32_1 = arith.constant 0 : i32
    return %c0_i32, %c0_i32_0 : i32, i32
  }
  func.func @transform_14(%arg0: i32) -> (i32, i32) {
    %c0_i32 = arith.constant 0 : i32
    %c0_i32_0 = arith.constant 0 : i32
    %c0_i32_1 = arith.constant 0 : i32
    return %c0_i32, %c0_i32_0 : i32, i32
  }
  func.func @transform_15(%arg0: i32) -> (i32, i32) {
    %c0_i32 = arith.constant 0 : i32
    %c0_i32_0 = arith.constant 0 : i32
    %c0_i32_1 = arith.constant 0 : i32
    return %c0_i32, %c0_i32_0 : i32, i32
  }
  func.func @transform_16(%arg0: i32) -> (i32, i32) {
    %c0_i32 = arith.constant 0 : i32
    %c0_i32_0 = arith.constant 0 : i32
    %c0_i32_1 = arith.constant 0 : i32
    return %c0_i32, %c0_i32_0 : i32, i32
  }
  func.func @transform_17(%arg0: i32) -> (i32, i32) {
    %c0_i32 = arith.constant 0 : i32
    %c0_i32_0 = arith.constant 0 : i32
    %c0_i32_1 = arith.constant 0 : i32
    return %c0_i32, %c0_i32_0 : i32, i32
  }
  func.func @transform_18(%arg0: i32) -> (i32, i32, i32) {
    %c0_i32 = arith.constant 0 : i32
    %c0_i32_0 = arith.constant 0 : i32
    %c0_i32_1 = arith.constant 0 : i32
    return %arg0, %c0_i32, %c0_i32_0 : i32, i32, i32
  }
}

</mosaic_0001>

<llo_original>
// kernel: tpu_custom_call.1
$region0: #{tpu_custom_call.1}
  #allocation0 [shape = 'u32[]', space=smem, size = 0x4, offset = 0x4, fixed_abs, tag = 'smem constant byte address 0x4 - core index']
  #allocation1 [shape = 'u32[72,128]{1,0:T(1,128)}', space=vmem, size = 0x9000, scoped, tag = 'internal scratch']
  %s0 = inlined_call_operand.vmem [shape: f32[2,8,32], index: 0, kind: input, shape index: {}]
  %s1 = inlined_call_operand.hbm [shape: f32[2,1,8], index: 1, kind: input, shape index: {}]
  %s2 = inlined_call_operand.vmem [shape: f32[1,32], index: 2, kind: input, shape index: {}]
  %s3 = inlined_call_operand.vmem [shape: f32[1,32], index: 3, kind: input, shape index: {}]
  %s4 = inlined_call_operand.vmem [shape: bf16[32,32], index: 4, kind: input, shape index: {}]
  %s5 = inlined_call_operand.vmem [shape: f32[1,32], index: 5, kind: input, shape index: {}]
  %s6 = inlined_call_operand.vmem [shape: bf16[32,32], index: 6, kind: input, shape index: {}]
  %s7 = inlined_call_operand.vmem [shape: f32[1,32], index: 7, kind: input, shape index: {}]
  %s8 = inlined_call_operand.hbm [shape: bf16[32,32], index: 8, kind: input, shape index: {}]
  %s9 = inlined_call_operand.vmem [shape: f32[1,32], index: 9, kind: input, shape index: {}]
  %s10 = inlined_call_operand.hbm [shape: bf16[32,32], index: 10, kind: input, shape index: {}]
  %s11 = inlined_call_operand.vmem [shape: f32[1,32], index: 11, kind: input, shape index: {}]
  %s12 = inlined_call_operand.vmem [shape: f32[1,32], index: 12, kind: input, shape index: {}]
  %s13 = inlined_call_operand.vmem [shape: f32[1,32], index: 13, kind: input, shape index: {}]
  %s14 = inlined_call_operand.hbm [shape: bf16[32,64], index: 14, kind: input, shape index: {}]
  %s15 = inlined_call_operand.vmem [shape: f32[1,64], index: 15, kind: input, shape index: {}]
  %s16 = inlined_call_operand.vmem [shape: bf16[64,32], index: 16, kind: input, shape index: {}]
  %s17 = inlined_call_operand.vmem [shape: f32[1,32], index: 17, kind: input, shape index: {}]
  %s18 = inlined_call_operand.hbm [shape: f32[2,8,32], index: 18, kind: output, shape index: {}]
  %s19 = sld [smem:[#allocation0]]
  $region121: #{tpu_custom_call.1} parent=0
    _
  %s21 = ssub.s32 1, %s19
  %s22 = scalar_select 0, %s21, %s19
  $region1: #{tpu_custom_call.1} parent=0
    #allocation2 [shape = 'u8[1024]{0}', space=vmem, size = 0x400, scoped, tag = 'input window, operand 1']
    #allocation3 [shape = 's32[2]{0}', space=sflag, size = 0x8, scoped, tag = 'scoped memory for tpu_custom_call.1']
    #allocation4 [shape = 's32[2]{0}', space=sflag, size = 0x8, scoped, tag = 'scoped memory for tpu_custom_call.1']
    #allocation5 [shape = 'u8[8192]{0}', space=vmem, size = 0x2000, scoped, tag = 'input window, operand 8, single buffered']
    #allocation6 [shape = 's32[1]{0}', space=sflag, size = 0x4, scoped, tag = 'scoped memory for tpu_custom_call.1']
    #allocation7 [shape = 'u8[8192]{0}', space=vmem, size = 0x2000, scoped, tag = 'input window, operand 10, single buffered']
    #allocation8 [shape = 'u8[8192]{0}', space=vmem, size = 0x2000, scoped, tag = 'input window, operand 14, single buffered']
    #allocation9 [shape = 's32[1]{0}', space=sflag, size = 0x4, scoped, tag = 'scoped memory for tpu_custom_call.1']
    #allocation10 [shape = 'u8[8192]{0}', space=vmem, size = 0x2000, scoped, tag = 'output window, operand 0']
    %23 = vsyncpa [#allocation3], 0
    %s24 = scalar_lea.sflag [#allocation3], 1
    %25 = vsyncpa %s24, 0
    %26 = vsyncpa [#allocation6], 0
    %27 = vsyncpa [#allocation9], 0
    %28 = vsyncpa [#allocation4], 0
    %s29 = scalar_lea.sflag [#allocation4], 1
    %30 = vsyncpa %s29, 0
    loop: start=0, step=1, limit=4
    $region2: #{tpu_custom_call.1} parent=1 // loop_pre_header
      _
    $region3: #{tpu_custom_call.1} parent=1 // loop_header
      %s32 = sphi 0, %s36
      %p33 = scmp.ge.s32.totalorder %s32, 4
      %s42 = sphi 0, %s44
      %s45 = sphi 0, %s42
      %s46 = sphi 0, %s45
      %s62 = sphi 0, %s46
      %s68 = sphi 0, %s70
      %s71 = sphi 0, %s68
      %s72 = sphi 0, %s71
      %s88 = sphi 0, %s72
      %s92 = sphi 0, %s92
      %s94 = sphi 0, %s92
      %s95 = sphi 0, %s94
      %s109 = sphi 0, %s95
      %s113 = sphi 0, %s113
      %s115 = sphi 0, %s113
      %s116 = sphi 0, %s115
      %s130 = sphi 0, %s116
      %s134 = sphi 0, %s134
      %s136 = sphi 0, %s134
      %s137 = sphi 0, %s136
      %s151 = sphi 0, %s137
      %s155 = sphi 0, %s155
      %s157 = sphi 0, %s155
      %s158 = sphi 0, %s157
      %s172 = sphi 0, %s158
      %s176 = sphi 0, %s176
      %s178 = sphi 0, %s176
      %s179 = sphi 0, %s178
      %s193 = sphi 0, %s179
      %s197 = sphi 0, %s197
      %s199 = sphi 0, %s197
      %s200 = sphi 0, %s199
      %s214 = sphi 0, %s200
      %s218 = sphi 0, %s218
      %s220 = sphi 0, %s218
      %s221 = sphi 0, %s220
      %s235 = sphi 0, %s221
      %s239 = sphi 0, %s239
      %s241 = sphi 0, %s239
      %s242 = sphi 0, %s241
      %s256 = sphi 0, %s242
      %s260 = sphi 0, %s260
      %s262 = sphi 0, %s260
      %s263 = sphi 0, %s262
      %s277 = sphi 0, %s263
      %s281 = sphi 0, %s281
      %s283 = sphi 0, %s281
      %s284 = sphi 0, %s283
      %s298 = sphi 0, %s284
      %s302 = sphi 0, %s302
      %s304 = sphi 0, %s302
      %s305 = sphi 0, %s304
      %s319 = sphi 0, %s305
      %s323 = sphi 0, %s323
      %s325 = sphi 0, %s323
      %s326 = sphi 0, %s325
      %s340 = sphi 0, %s326
      %s344 = sphi 0, %s344
      %s346 = sphi 0, %s344
      %s347 = sphi 0, %s346
      %s361 = sphi 0, %s347
      %s365 = sphi 0, %s365
      %s367 = sphi 0, %s365
      %s368 = sphi 0, %s367
      %s382 = sphi 0, %s368
      %s386 = sphi 0, %s386
      %s388 = sphi 0, %s386
      %s389 = sphi 0, %s388
      %s403 = sphi 0, %s389
      %s407 = sphi 0, %s407
      %s409 = sphi 0, %s407
      %s410 = sphi 0, %s409
      %s424 = sphi 0, %s410
      %s430 = sphi 0, %s432
      %s433 = sphi 0, %s430
      %s434 = sphi 0, %s433
      %s450 = sphi 0, %s434
    $region4: #{tpu_custom_call.1} parent=1 // loop_header_branch
      %35 = sbr.rel (%p33) target = $region8
    $region5: #{tpu_custom_call.1} parent=1 // loop_body
      %s37 = ssub.s32 %s32, 1
      %s38 = ssub.s32 %s32, 2
      %s39 = sadd.s32 %s32, 1
      %s40 = ssub.s32 %s32, %s39
      %p41 = scmp.eq.s32.totalorder %s40, 0
      %s43 = sadd.s32 %s42, 1
      %s44 = scalar_select %p41, %s42, %s43
      %p47 = pneg %p41
      %p48 = scmp.eq.s32.totalorder %s32, 1
      %p49 = por %p47, %p48
      %p50 = scmp.ne.s32.totalorder %s42, %s45
      %p51 = scmp.eq.s32.totalorder %s32, 0
      %p52 = por %p50, %p51
      %p53 = scmp.ne.s32.totalorder %s42, %s45
      %p54 = scmp.eq.s32.totalorder %s37, 1
      %p55 = por %p53, %p54
      %p56 = scmp.ne.s32.totalorder %s45, %s46
      %p57 = scmp.eq.s32.totalorder %s37, 0
      %p58 = por %p56, %p57
      %p59 = scmp.ne.s32.totalorder %s45, %s46
      %p60 = scmp.eq.s32.totalorder %s38, 1
      %p61 = por %p59, %p60
      %p63 = scmp.ne.s32.totalorder %s46, %s62
      %p64 = scmp.eq.s32.totalorder %s38, 0
      %p65 = por %p63, %p64
      %s66 = ssub.s32 %s32, %s39
      %p67 = scmp.eq.s32.totalorder %s66, 0
      %s69 = sadd.s32 %s68, 1
      %s70 = scalar_select %p67, %s68, %s69
      %p73 = pneg %p67
      %p74 = scmp.eq.s32.totalorder %s32, 1
      %p75 = por %p73, %p74
      %p76 = scmp.ne.s32.totalorder %s68, %s71
      %p77 = scmp.eq.s32.totalorder %s32, 0
      %p78 = por %p76, %p77
      %p79 = scmp.ne.s32.totalorder %s68, %s71
      %p80 = scmp.eq.s32.totalorder %s37, 1
      %p81 = por %p79, %p80
      %p82 = scmp.ne.s32.totalorder %s71, %s72
      %p83 = scmp.eq.s32.totalorder %s37, 0
      %p84 = por %p82, %p83
      %p85 = scmp.ne.s32.totalorder %s71, %s72
      %p86 = scmp.eq.s32.totalorder %s38, 1
      %p87 = por %p85, %p86
      %p89 = scmp.ne.s32.totalorder %s72, %s88
      %p90 = scmp.eq.s32.totalorder %s38, 0
      %p91 = por %p89, %p90
      %s93 = sadd.s32 %s92, 1
      %p96 = scmp.eq.s32.totalorder %s32, 1
      %p97 = scmp.ne.s32.totalorder %s92, %s94
      %p98 = scmp.eq.s32.totalorder %s32, 0
      %p99 = por %p97, %p98
      %p100 = scmp.ne.s32.totalorder %s92, %s94
      %p101 = scmp.eq.s32.totalorder %s37, 1
      %p102 = por %p100, %p101
      %p103 = scmp.ne.s32.totalorder %s94, %s95
      %p104 = scmp.eq.s32.totalorder %s37, 0
      %p105 = por %p103, %p104
      %p106 = scmp.ne.s32.totalorder %s94, %s95
      %p107 = scmp.eq.s32.totalorder %s38, 1
      %p108 = por %p106, %p107
      %p110 = scmp.ne.s32.totalorder %s95, %s109
      %p111 = scmp.eq.s32.totalorder %s38, 0
      %p112 = por %p110, %p111
      %s114 = sadd.s32 %s113, 1
      %p117 = scmp.eq.s32.totalorder %s32, 1
      %p118 = scmp.ne.s32.totalorder %s113, %s115
      %p119 = scmp.eq.s32.totalorder %s32, 0
      %p120 = por %p118, %p119
      %p121 = scmp.ne.s32.totalorder %s113, %s115
      %p122 = scmp.eq.s32.totalorder %s37, 1
      %p123 = por %p121, %p122
      %p124 = scmp.ne.s32.totalorder %s115, %s116
      %p125 = scmp.eq.s32.totalorder %s37, 0
      %p126 = por %p124, %p125
      %p127 = scmp.ne.s32.totalorder %s115, %s116
      %p128 = scmp.eq.s32.totalorder %s38, 1
      %p129 = por %p127, %p128
      %p131 = scmp.ne.s32.totalorder %s116, %s130
      %p132 = scmp.eq.s32.totalorder %s38, 0
      %p133 = por %p131, %p132
      %s135 = sadd.s32 %s134, 1
      %p138 = scmp.eq.s32.totalorder %s32, 1
      %p139 = scmp.ne.s32.totalorder %s134, %s136
      %p140 = scmp.eq.s32.totalorder %s32, 0
      %p141 = por %p139, %p140
      %p142 = scmp.ne.s32.totalorder %s134, %s136
      %p143 = scmp.eq.s32.totalorder %s37, 1
      %p144 = por %p142, %p143
      %p145 = scmp.ne.s32.totalorder %s136, %s137
      %p146 = scmp.eq.s32.totalorder %s37, 0
      %p147 = por %p145, %p146
      %p148 = scmp.ne.s32.totalorder %s136, %s137
      %p149 = scmp.eq.s32.totalorder %s38, 1
      %p150 = por %p148, %p149
      %p152 = scmp.ne.s32.totalorder %s137, %s151
      %p153 = scmp.eq.s32.totalorder %s38, 0
      %p154 = por %p152, %p153
      %s156 = sadd.s32 %s155, 1
      %p159 = scmp.eq.s32.totalorder %s32, 1
      %p160 = scmp.ne.s32.totalorder %s155, %s157
      %p161 = scmp.eq.s32.totalorder %s32, 0
      %p162 = por %p160, %p161
      %p163 = scmp.ne.s32.totalorder %s155, %s157
      %p164 = scmp.eq.s32.totalorder %s37, 1
      %p165 = por %p163, %p164
      %p166 = scmp.ne.s32.totalorder %s157, %s158
      %p167 = scmp.eq.s32.totalorder %s37, 0
      %p168 = por %p166, %p167
      %p169 = scmp.ne.s32.totalorder %s157, %s158
      %p170 = scmp.eq.s32.totalorder %s38, 1
      %p171 = por %p169, %p170
      %p173 = scmp.ne.s32.totalorder %s158, %s172
      %p174 = scmp.eq.s32.totalorder %s38, 0
      %p175 = por %p173, %p174
      %s177 = sadd.s32 %s176, 1
      %p180 = scmp.eq.s32.totalorder %s32, 1
      %p181 = scmp.ne.s32.totalorder %s176, %s178
      %p182 = scmp.eq.s32.totalorder %s32, 0
      %p183 = por %p181, %p182
      %p184 = scmp.ne.s32.totalorder %s176, %s178
      %p185 = scmp.eq.s32.totalorder %s37, 1
      %p186 = por %p184, %p185
      %p187 = scmp.ne.s32.totalorder %s178, %s179
      %p188 = scmp.eq.s32.totalorder %s37, 0
      %p189 = por %p187, %p188
      %p190 = scmp.ne.s32.totalorder %s178, %s179
      %p191 = scmp.eq.s32.totalorder %s38, 1
      %p192 = por %p190, %p191
      %p194 = scmp.ne.s32.totalorder %s179, %s193
      %p195 = scmp.eq.s32.totalorder %s38, 0
      %p196 = por %p194, %p195
      %s198 = sadd.s32 %s197, 1
      %p201 = scmp.eq.s32.totalorder %s32, 1
      %p202 = scmp.ne.s32.totalorder %s197, %s199
      %p203 = scmp.eq.s32.totalorder %s32, 0
      %p204 = por %p202, %p203
      %p205 = scmp.ne.s32.totalorder %s197, %s199
      %p206 = scmp.eq.s32.totalorder %s37, 1
      %p207 = por %p205, %p206
      %p208 = scmp.ne.s32.totalorder %s199, %s200
      %p209 = scmp.eq.s32.totalorder %s37, 0
      %p210 = por %p208, %p209
      %p211 = scmp.ne.s32.totalorder %s199, %s200
      %p212 = scmp.eq.s32.totalorder %s38, 1
      %p213 = por %p211, %p212
      %p215 = scmp.ne.s32.totalorder %s200, %s214
      %p216 = scmp.eq.s32.totalorder %s38, 0
      %p217 = por %p215, %p216
      %s219 = sadd.s32 %s218, 1
      %p222 = scmp.eq.s32.totalorder %s32, 1
      %p223 = scmp.ne.s32.totalorder %s218, %s220
      %p224 = scmp.eq.s32.totalorder %s32, 0
      %p225 = por %p223, %p224
      %p226 = scmp.ne.s32.totalorder %s218, %s220
      %p227 = scmp.eq.s32.totalorder %s37, 1
      %p228 = por %p226, %p227
      %p229 = scmp.ne.s32.totalorder %s220, %s221
      %p230 = scmp.eq.s32.totalorder %s37, 0
      %p231 = por %p229, %p230
      %p232 = scmp.ne.s32.totalorder %s220, %s221
      %p233 = scmp.eq.s32.totalorder %s38, 1
      %p234 = por %p232, %p233
      %p236 = scmp.ne.s32.totalorder %s221, %s235
      %p237 = scmp.eq.s32.totalorder %s38, 0
      %p238 = por %p236, %p237
      %s240 = sadd.s32 %s239, 1
      %p243 = scmp.eq.s32.totalorder %s32, 1
      %p244 = scmp.ne.s32.totalorder %s239, %s241
      %p245 = scmp.eq.s32.totalorder %s32, 0
      %p246 = por %p244, %p245
      %p247 = scmp.ne.s32.totalorder %s239, %s241
      %p248 = scmp.eq.s32.totalorder %s37, 1
      %p249 = por %p247, %p248
      %p250 = scmp.ne.s32.totalorder %s241, %s242
      %p251 = scmp.eq.s32.totalorder %s37, 0
      %p252 = por %p250, %p251
      %p253 = scmp.ne.s32.totalorder %s241, %s242
      %p254 = scmp.eq.s32.totalorder %s38, 1
      %p255 = por %p253, %p254
      %p257 = scmp.ne.s32.totalorder %s242, %s256
      %p258 = scmp.eq.s32.totalorder %s38, 0
      %p259 = por %p257, %p258
      %s261 = sadd.s32 %s260, 1
      %p264 = scmp.eq.s32.totalorder %s32, 1
      %p265 = scmp.ne.s32.totalorder %s260, %s262
      %p266 = scmp.eq.s32.totalorder %s32, 0
      %p267 = por %p265, %p266
      %p268 = scmp.ne.s32.totalorder %s260, %s262
      %p269 = scmp.eq.s32.totalorder %s37, 1
      %p270 = por %p268, %p269
      %p271 = scmp.ne.s32.totalorder %s262, %s263
      %p272 = scmp.eq.s32.totalorder %s37, 0
      %p273 = por %p271, %p272
      %p274 = scmp.ne.s32.totalorder %s262, %s263
      %p275 = scmp.eq.s32.totalorder %s38, 1
      %p276 = por %p274, %p275
      %p278 = scmp.ne.s32.totalorder %s263, %s277
      %p279 = scmp.eq.s32.totalorder %s38, 0
      %p280 = por %p278, %p279
      %s282 = sadd.s32 %s281, 1
      %p285 = scmp.eq.s32.totalorder %s32, 1
      %p286 = scmp.ne.s32.totalorder %s281, %s283
      %p287 = scmp.eq.s32.totalorder %s32, 0
      %p288 = por %p286, %p287
      %p289 = scmp.ne.s32.totalorder %s281, %s283
      %p290 = scmp.eq.s32.totalorder %s37, 1
      %p291 = por %p289, %p290
      %p292 = scmp.ne.s32.totalorder %s283, %s284
      %p293 = scmp.eq.s32.totalorder %s37, 0
      %p294 = por %p292, %p293
      %p295 = scmp.ne.s32.totalorder %s283, %s284
      %p296 = scmp.eq.s32.totalorder %s38, 1
      %p297 = por %p295, %p296
      %p299 = scmp.ne.s32.totalorder %s284, %s298
      %p300 = scmp.eq.s32.totalorder %s38, 0
      %p301 = por %p299, %p300
      %s303 = sadd.s32 %s302, 1
      %p306 = scmp.eq.s32.totalorder %s32, 1
      %p307 = scmp.ne.s32.totalorder %s302, %s304
      %p308 = scmp.eq.s32.totalorder %s32, 0
      %p309 = por %p307, %p308
      %p310 = scmp.ne.s32.totalorder %s302, %s304
      %p311 = scmp.eq.s32.totalorder %s37, 1
      %p312 = por %p310, %p311
      %p313 = scmp.ne.s32.totalorder %s304, %s305
      %p314 = scmp.eq.s32.totalorder %s37, 0
      %p315 = por %p313, %p314
      %p316 = scmp.ne.s32.totalorder %s304, %s305
      %p317 = scmp.eq.s32.totalorder %s38, 1
      %p318 = por %p316, %p317
      %p320 = scmp.ne.s32.totalorder %s305, %s319
      %p321 = scmp.eq.s32.totalorder %s38, 0
      %p322 = por %p320, %p321
      %s324 = sadd.s32 %s323, 1
      %p327 = scmp.eq.s32.totalorder %s32, 1
      %p328 = scmp.ne.s32.totalorder %s323, %s325
      %p329 = scmp.eq.s32.totalorder %s32, 0
      %p330 = por %p328, %p329
      %p331 = scmp.ne.s32.totalorder %s323, %s325
      %p332 = scmp.eq.s32.totalorder %s37, 1
      %p333 = por %p331, %p332
      %p334 = scmp.ne.s32.totalorder %s325, %s326
      %p335 = scmp.eq.s32.totalorder %s37, 0
      %p336 = por %p334, %p335
      %p337 = scmp.ne.s32.totalorder %s325, %s326
      %p338 = scmp.eq.s32.totalorder %s38, 1
      %p339 = por %p337, %p338
      %p341 = scmp.ne.s32.totalorder %s326, %s340
      %p342 = scmp.eq.s32.totalorder %s38, 0
      %p343 = por %p341, %p342
      %s345 = sadd.s32 %s344, 1
      %p348 = scmp.eq.s32.totalorder %s32, 1
      %p349 = scmp.ne.s32.totalorder %s344, %s346
      %p350 = scmp.eq.s32.totalorder %s32, 0
      %p351 = por %p349, %p350
      %p352 = scmp.ne.s32.totalorder %s344, %s346
      %p353 = scmp.eq.s32.totalorder %s37, 1
      %p354 = por %p352, %p353
      %p355 = scmp.ne.s32.totalorder %s346, %s347
      %p356 = scmp.eq.s32.totalorder %s37, 0
      %p357 = por %p355, %p356
      %p358 = scmp.ne.s32.totalorder %s346, %s347
      %p359 = scmp.eq.s32.totalorder %s38, 1
      %p360 = por %p358, %p359
      %p362 = scmp.ne.s32.totalorder %s347, %s361
      %p363 = scmp.eq.s32.totalorder %s38, 0
      %p364 = por %p362, %p363
      %s366 = sadd.s32 %s365, 1
      %p369 = scmp.eq.s32.totalorder %s32, 1
      %p370 = scmp.ne.s32.totalorder %s365, %s367
      %p371 = scmp.eq.s32.totalorder %s32, 0
      %p372 = por %p370, %p371
      %p373 = scmp.ne.s32.totalorder %s365, %s367
      %p374 = scmp.eq.s32.totalorder %s37, 1
      %p375 = por %p373, %p374
      %p376 = scmp.ne.s32.totalorder %s367, %s368
      %p377 = scmp.eq.s32.totalorder %s37, 0
      %p378 = por %p376, %p377
      %p379 = scmp.ne.s32.totalorder %s367, %s368
      %p380 = scmp.eq.s32.totalorder %s38, 1
      %p381 = por %p379, %p380
      %p383 = scmp.ne.s32.totalorder %s368, %s382
      %p384 = scmp.eq.s32.totalorder %s38, 0
      %p385 = por %p383, %p384
      %s387 = sadd.s32 %s386, 1
      %p390 = scmp.eq.s32.totalorder %s32, 1
      %p391 = scmp.ne.s32.totalorder %s386, %s388
      %p392 = scmp.eq.s32.totalorder %s32, 0
      %p393 = por %p391, %p392
      %p394 = scmp.ne.s32.totalorder %s386, %s388
      %p395 = scmp.eq.s32.totalorder %s37, 1
      %p396 = por %p394, %p395
      %p397 = scmp.ne.s32.totalorder %s388, %s389
      %p398 = scmp.eq.s32.totalorder %s37, 0
      %p399 = por %p397, %p398
      %p400 = scmp.ne.s32.totalorder %s388, %s389
      %p401 = scmp.eq.s32.totalorder %s38, 1
      %p402 = por %p400, %p401
      %p404 = scmp.ne.s32.totalorder %s389, %s403
      %p405 = scmp.eq.s32.totalorder %s38, 0
      %p406 = por %p404, %p405
      %s408 = sadd.s32 %s407, 1
      %p411 = scmp.eq.s32.totalorder %s32, 1
      %p412 = scmp.ne.s32.totalorder %s407, %s409
      %p413 = scmp.eq.s32.totalorder %s32, 0
      %p414 = por %p412, %p413
      %p415 = scmp.ne.s32.totalorder %s407, %s409
      %p416 = scmp.eq.s32.totalorder %s37, 1
      %p417 = por %p415, %p416
      %p418 = scmp.ne.s32.totalorder %s409, %s410
      %p419 = scmp.eq.s32.totalorder %s37, 0
      %p420 = por %p418, %p419
      %p421 = scmp.ne.s32.totalorder %s409, %s410
      %p422 = scmp.eq.s32.totalorder %s38, 1
      %p423 = por %p421, %p422
      %p425 = scmp.ne.s32.totalorder %s410, %s424
      %p426 = scmp.eq.s32.totalorder %s38, 0
      %p427 = por %p425, %p426
      %s428 = ssub.s32 %s32, %s39
      %p429 = scmp.eq.s32.totalorder %s428, 0
      %s431 = sadd.s32 %s430, 1
      %s432 = scalar_select %p429, %s430, %s431
      %p435 = pneg %p429
      %p436 = scmp.eq.s32.totalorder %s32, 1
      %p437 = por %p435, %p436
      %p438 = scmp.ne.s32.totalorder %s430, %s433
      %p439 = scmp.eq.s32.totalorder %s32, 0
      %p440 = por %p438, %p439
      %p441 = scmp.ne.s32.totalorder %s430, %s433
      %p442 = scmp.eq.s32.totalorder %s37, 1
      %p443 = por %p441, %p442
      %p444 = scmp.ne.s32.totalorder %s433, %s434
      %p445 = scmp.eq.s32.totalorder %s37, 0
      %p446 = por %p444, %p445
      %p447 = scmp.ne.s32.totalorder %s433, %s434
      %p448 = scmp.eq.s32.totalorder %s38, 1
      %p449 = por %p447, %p448
      %p451 = scmp.ne.s32.totalorder %s434, %s450
      %p452 = scmp.eq.s32.totalorder %s38, 0
      %p453 = por %p451, %p452
      %p454 = scmp.le.s32.totalorder 1, %s32
      %p455 = scmp.lt.s32.totalorder %s32, 3
      %p456 = pnand %p454, %p455
      %p457 = pneg %p456
      // Predicated region
      $region9: #{tpu_custom_call.1} parent=5 // pred_check
        _
      $region10: #{tpu_custom_call.1} parent=5 // pred_check_branch
        %459 = sbr.rel (%p456) target = $region12
      $region11: #{tpu_custom_call.1} parent=5 // pred_region
        %s460 = ssub.s32 %s32, 1
        // Predicated region
        $region13: #{tpu_custom_call.1} parent=11 // pred_check
          %p461 = pneg %p105
        $region14: #{tpu_custom_call.1} parent=11 // pred_check_branch
          %463 = sbr.rel (%p461) target = $region16
        $region15: #{tpu_custom_call.1} parent=11 // pred_region
          _
        $region16: #{tpu_custom_call.1} parent=11 // pred_fallthru
          _
        // Predicated region
        $region17: #{tpu_custom_call.1} parent=11 // pred_check
          %p464 = pneg %p126
        $region18: #{tpu_custom_call.1} parent=11 // pred_check_branch
          %466 = sbr.rel (%p464) target = $region20
        $region19: #{tpu_custom_call.1} parent=11 // pred_region
          _
        $region20: #{tpu_custom_call.1} parent=11 // pred_fallthru
          _
        // Predicated region
        $region21: #{tpu_custom_call.1} parent=11 // pred_check
          %p467 = pneg %p147
        $region22: #{tpu_custom_call.1} parent=11 // pred_check_branch
          %469 = sbr.rel (%p467) target = $region24
        $region23: #{tpu_custom_call.1} parent=11 // pred_region
          _
        $region24: #{tpu_custom_call.1} parent=11 // pred_fallthru
          _
        // Predicated region
        $region25: #{tpu_custom_call.1} parent=11 // pred_check
          %p470 = pneg %p168
        $region26: #{tpu_custom_call.1} parent=11 // pred_check_branch
          %472 = sbr.rel (%p470) target = $region28
        $region27: #{tpu_custom_call.1} parent=11 // pred_region
          _
        $region28: #{tpu_custom_call.1} parent=11 // pred_fallthru
          _
        // Predicated region
        $region29: #{tpu_custom_call.1} parent=11 // pred_check
          %p473 = pneg %p189
        $region30: #{tpu_custom_call.1} parent=11 // pred_check_branch
          %475 = sbr.rel (%p473) target = $region32
        $region31: #{tpu_custom_call.1} parent=11 // pred_region
          _
        $region32: #{tpu_custom_call.1} parent=11 // pred_fallthru
          _
        // Predicated region
        $region33: #{tpu_custom_call.1} parent=11 // pred_check
          %p476 = pneg %p210
        $region34: #{tpu_custom_call.1} parent=11 // pred_check_branch
          %478 = sbr.rel (%p476) target = $region36
        $region35: #{tpu_custom_call.1} parent=11 // pred_region
          _
        $region36: #{tpu_custom_call.1} parent=11 // pred_fallthru
          _
        // Predicated region
        $region37: #{tpu_custom_call.1} parent=11 // pred_check
          %p479 = pneg %p231
        $region38: #{tpu_custom_call.1} parent=11 // pred_check_branch
          %481 = sbr.rel (%p479) target = $region40
        $region39: #{tpu_custom_call.1} parent=11 // pred_region
          %483 = vsyncadd [#allocation6], 0
          %s484 = sshll.u32 %s8, 4
          %s485 = int_to_ptr.hbm [resolvable:$true] %s484
          %s486 = sshll.u32 [#allocation5], 4
          %s487 = int_to_ptr.vmem [resolvable:$true] %s486
          %492 = dma.hbm_to_vmem [thread:$0]  %s485, 256, %s487, [#allocation6], 64, 64, 4
        $region40: #{tpu_custom_call.1} parent=11 // pred_fallthru
          _
        // Predicated region
        $region41: #{tpu_custom_call.1} parent=11 // pred_check
          %p493 = pneg %p252
        $region42: #{tpu_custom_call.1} parent=11 // pred_check_branch
          %495 = sbr.rel (%p493) target = $region44
        $region43: #{tpu_custom_call.1} parent=11 // pred_region
          _
        $region44: #{tpu_custom_call.1} parent=11 // pred_fallthru
          _
        // Predicated region
        $region45: #{tpu_custom_call.1} parent=11 // pred_check
          %p496 = pneg %p273
        $region46: #{tpu_custom_call.1} parent=11 // pred_check_branch
          %498 = sbr.rel (%p496) target = $region48
        $region47: #{tpu_custom_call.1} parent=11 // pred_region
          %500 = vsyncadd [#allocation6], 0
          %s501 = sshll.u32 %s10, 4
          %s502 = int_to_ptr.hbm [resolvable:$true] %s501
          %s503 = sshll.u32 [#allocation7], 4
          %s504 = int_to_ptr.vmem [resolvable:$true] %s503
          %509 = dma.hbm_to_vmem [thread:$0]  %s502, 256, %s504, [#allocation6], 64, 64, 4
        $region48: #{tpu_custom_call.1} parent=11 // pred_fallthru
          _
        // Predicated region
        $region49: #{tpu_custom_call.1} parent=11 // pred_check
          %p510 = pneg %p294
        $region50: #{tpu_custom_call.1} parent=11 // pred_check_branch
          %512 = sbr.rel (%p510) target = $region52
        $region51: #{tpu_custom_call.1} parent=11 // pred_region
          _
        $region52: #{tpu_custom_call.1} parent=11 // pred_fallthru
          _
        // Predicated region
        $region53: #{tpu_custom_call.1} parent=11 // pred_check
          %p513 = pneg %p315
        $region54: #{tpu_custom_call.1} parent=11 // pred_check_branch
          %515 = sbr.rel (%p513) target = $region56
        $region55: #{tpu_custom_call.1} parent=11 // pred_region
          _
        $region56: #{tpu_custom_call.1} parent=11 // pred_fallthru
          _
        // Predicated region
        $region57: #{tpu_custom_call.1} parent=11 // pred_check
          %p516 = pneg %p336
        $region58: #{tpu_custom_call.1} parent=11 // pred_check_branch
          %518 = sbr.rel (%p516) target = $region60
        $region59: #{tpu_custom_call.1} parent=11 // pred_region
          _
        $region60: #{tpu_custom_call.1} parent=11 // pred_fallthru
          _
        // Predicated region
        $region61: #{tpu_custom_call.1} parent=11 // pred_check
          %p519 = pneg %p357
        $region62: #{tpu_custom_call.1} parent=11 // pred_check_branch
          %521 = sbr.rel (%p519) target = $region64
        $region63: #{tpu_custom_call.1} parent=11 // pred_region
          %523 = vsyncadd [#allocation9], 0
          %s524 = sshll.u32 %s14, 4
          %s525 = int_to_ptr.hbm [resolvable:$true] %s524
          %s526 = sshll.u32 [#allocation8], 4
          %s527 = int_to_ptr.vmem [resolvable:$true] %s526
          %532 = dma.hbm_to_vmem [thread:$0]  %s525, 256, %s527, [#allocation9], 64, 64, 4
        $region64: #{tpu_custom_call.1} parent=11 // pred_fallthru
          _
        // Predicated region
        $region65: #{tpu_custom_call.1} parent=11 // pred_check
          %p533 = pneg %p378
        $region66: #{tpu_custom_call.1} parent=11 // pred_check_branch
          %535 = sbr.rel (%p533) target = $region68
        $region67: #{tpu_custom_call.1} parent=11 // pred_region
          _
        $region68: #{tpu_custom_call.1} parent=11 // pred_fallthru
          _
        // Predicated region
        $region69: #{tpu_custom_call.1} parent=11 // pred_check
          %p536 = pneg %p399
        $region70: #{tpu_custom_call.1} parent=11 // pred_check_branch
          %538 = sbr.rel (%p536) target = $region72
        $region71: #{tpu_custom_call.1} parent=11 // pred_region
          _
        $region72: #{tpu_custom_call.1} parent=11 // pred_fallthru
          _
        // Predicated region
        $region73: #{tpu_custom_call.1} parent=11 // pred_check
          %p539 = pneg %p420
        $region74: #{tpu_custom_call.1} parent=11 // pred_check_branch
          %541 = sbr.rel (%p539) target = $region76
        $region75: #{tpu_custom_call.1} parent=11 // pred_region
          _
        $region76: #{tpu_custom_call.1} parent=11 // pred_fallthru
          _
      $region12: #{tpu_custom_call.1} parent=5 // pred_fallthru
        _
      %p542 = scmp.lt.s32.totalorder %s32, 2
      // Predicated region
      $region77: #{tpu_custom_call.1} parent=5 // pred_check
        %p543 = pneg %p542
      $region78: #{tpu_custom_call.1} parent=5 // pred_check_branch
        %545 = sbr.rel (%p543) target = $region80
      $region79: #{tpu_custom_call.1} parent=5 // pred_region
        // Predicated region
        $region81: #{tpu_custom_call.1} parent=79 // pred_check
          %p546 = pneg %p52
        $region82: #{tpu_custom_call.1} parent=79 // pred_check_branch
          %548 = sbr.rel (%p546) target = $region84
        $region83: #{tpu_custom_call.1} parent=79 // pred_region
          %p549 = scmp.lt.s32.totalorder %s32, 1
          %s550 = scalar_select %p549, %s32, 1
          %s551 = smul.addr %s550, 8
          %s552 = scalar_lea.vmem %s0, %s551
        $region84: #{tpu_custom_call.1} parent=79 // pred_fallthru
          _
        // Predicated region
        $region85: #{tpu_custom_call.1} parent=79 // pred_check
          %p553 = pneg %p78
        $region86: #{tpu_custom_call.1} parent=79 // pred_check_branch
          %555 = sbr.rel (%p553) target = $region88
        $region87: #{tpu_custom_call.1} parent=79 // pred_region
          %s556 = sand.u32 %s68, 1
          %s557 = scalar_lea.sflag [#allocation3], %s556
          %s558 = sand.u32 %s68, 1
          %s559 = scalar_lea.vmem [#allocation2], %s558
          %561 = vsyncadd %s557, 0
          %s562 = scalar_lea.hbm %s1, %s32
          %s564 = sshll.u32 %s562, 4
          %s565 = int_to_ptr.hbm [resolvable:$true] %s564
          %s566 = sshll.u32 %s559, 4
          %s567 = int_to_ptr.vmem [resolvable:$true] %s566
          %569 = dma.hbm_to_vmem [thread:$0]  %s565, 16, %s567, %s557
        $region88: #{tpu_custom_call.1} parent=79 // pred_fallthru
          _
      $region80: #{tpu_custom_call.1} parent=5 // pred_fallthru
        _
      %p570 = scmp.le.s32.totalorder 1, %s32
      %p571 = scmp.lt.s32.totalorder %s32, 3
      %p572 = pnand %p570, %p571
      %p573 = pneg %p572
      // Predicated region
      $region89: #{tpu_custom_call.1} parent=5 // pred_check
        _
      $region90: #{tpu_custom_call.1} parent=5 // pred_check_branch
        %575 = sbr.rel (%p572) target = $region92
      $region91: #{tpu_custom_call.1} parent=5 // pred_region
        %s576 = ssub.s32 %s32, 1
        %s577 = sand.u32 %s71, 1
        %s578 = scalar_lea.sflag [#allocation3], %s577
        %s579 = sand.u32 %s71, 1
        %s580 = scalar_lea.vmem [#allocation2], %s579
        // Predicated region
        $region93: #{tpu_custom_call.1} parent=91 // pred_check
          %p581 = pneg %p84
        $region94: #{tpu_custom_call.1} parent=91 // pred_check_branch
          %583 = sbr.rel (%p581) target = $region96
        $region95: #{tpu_custom_call.1} parent=91 // pred_region
          %585 = dma.done %s578, 16
        $region96: #{tpu_custom_call.1} parent=91 // pred_fallthru
          _
        // Predicated region
        $region97: #{tpu_custom_call.1} parent=91 // pred_check
          %p586 = pneg %p231
        $region98: #{tpu_custom_call.1} parent=91 // pred_check_branch
          %588 = sbr.rel (%p586) target = $region100
        $region99: #{tpu_custom_call.1} parent=91 // pred_region
          %590 = dma.done [#allocation6], 256
        $region100: #{tpu_custom_call.1} parent=91 // pred_fallthru
          _
        // Predicated region
        $region101: #{tpu_custom_call.1} parent=91 // pred_check
          %p591 = pneg %p273
        $region102: #{tpu_custom_call.1} parent=91 // pred_check_branch
          %593 = sbr.rel (%p591) target = $region104
        $region103: #{tpu_custom_call.1} parent=91 // pred_region
          %595 = dma.done [#allocation6], 256
        $region104: #{tpu_custom_call.1} parent=91 // pred_fallthru
          _
        // Predicated region
        $region105: #{tpu_custom_call.1} parent=91 // pred_check
          %p596 = pneg %p357
        $region106: #{tpu_custom_call.1} parent=91 // pred_check_branch
          %598 = sbr.rel (%p596) target = $region108
        $region107: #{tpu_custom_call.1} parent=91 // pred_region
          %600 = dma.done [#allocation9], 256
        $region108: #{tpu_custom_call.1} parent=91 // pred_fallthru
          _
        %p601 = scmp.lt.s32.totalorder %s37, 1
        %s602 = scalar_select %p601, %s37, 1
        %s603 = smul.addr %s602, 8
        %s604 = scalar_lea.vmem %s0, %s603
        %p605 = pneg %p58
        %p606 = pneg %p55
        %s607 = sand.u32 %s71, 1
        %s608 = scalar_lea.sflag [#allocation3], %s607
        %s609 = sand.u32 %s71, 1
        %s610 = scalar_lea.vmem [#allocation2], %s609
        %p611 = pneg %p84
        %p612 = pneg %p81
        %p613 = pneg %p105
        %p614 = pneg %p102
        %p615 = pneg %p126
        %p616 = pneg %p123
        %p617 = pneg %p147
        %p618 = pneg %p144
        %p619 = pneg %p168
        %p620 = pneg %p165
        %p621 = pneg %p189
        %p622 = pneg %p186
        %p623 = pneg %p210
        %p624 = pneg %p207
        %p625 = pneg %p231
        %p626 = pneg %p228
        %p627 = pneg %p252
        %p628 = pneg %p249
        %p629 = pneg %p273
        %p630 = pneg %p270
        %p631 = pneg %p294
        %p632 = pneg %p291
        %p633 = pneg %p315
        %p634 = pneg %p312
        %p635 = pneg %p336
        %p636 = pneg %p333
        %p637 = pneg %p357
        %p638 = pneg %p354
        %p639 = pneg %p378
        %p640 = pneg %p375
        %p641 = pneg %p399
        %p642 = pneg %p396
        %p643 = pneg %p420
        %p644 = pneg %p417
        %p645 = pneg %p446
        %p646 = pneg %p443
        %s647 = sand.u32 %s433, 1
        %s648 = scalar_lea.sflag [#allocation4], %s647
        %s649 = sand.u32 %s433, 1
        %s650 = smul.addr %s649, 8
        %s651 = scalar_lea.vmem [#allocation10], %s650
        %p652 = scmp.lt.s32.totalorder %s37, 1
        %s653 = scalar_select %p652, %s37, 1
        %s654 = smul.addr %s653, 8
        %s655 = scalar_lea.vmem %s0, %s654
        %v657 = vld [vmem:[%s655] sm:$0xff]
        %v658 = vld [vmem:[%s580] sm:$0x1]
        %vm659 = vcmp.eq.f32.partialorder %v658, 0.0
        %v660 = vsel %vm659, -1e+30, 0.0
        %v661 = vld [vmem:[%s2] sm:$0x1]
        %v662 = vld [vmem:[%s3] sm:$0x1]
        %vm663 = vcmask 261120
        %v664 = vsel %vm663, %v657, 0.0
        %665 = vadd.xlane.f32.xlu0 %v664
        %v666 = vpop.xlane.xlu0 %665
        %v667 = vrcp.pop 32.0
        %v668 = vmul.f32 32.0, %v667
        %v669 = vsub.f32 1.0, %v668
        %v670 = vmul.f32 %v667, %v669
        %v671 = vadd.f32 %v667, %v670
        %vm672 = vweird.f32 %v667
        %v673 = vsel %vm672, %v667, %v671
        %v674 = vmul.f32 %v666, %v673
        %v675 = vsub.f32 %v657, %v674
        %v676 = vmul.f32 %v675, %v675
        %v677 = vsel %vm663, %v676, 0.0
        %678 = vadd.xlane.f32.xlu0 %v677
        %v679 = vpop.xlane.xlu0 %678
        %v680 = vmul.f32 %v679, %v673
        %v681 = vadd.f32 %v680, 1e-05
        %v682 = vrsqrt.pop %v681
        %v683 = vmul.f32 %v682, %v681
        %v684 = vmul.f32 %v683, %v682
        %v685 = vmul.f32 0.5, %v684
        %v686 = vsub.f32 1.5, %v685
        %v687 = vmul.f32 %v682, %v686
        %vm688 = vweird.f32 %v681
        %vm689 = vweird.f32 %v682
        %vm690 = vmor %vm688, %vm689
        %v691 = vsel %vm690, %v682, %v687
        %v692 = vmul.f32 %v675, %v691
        %v694 = vperm.slane %v661, 0
        %v696 = vmul.f32 %v692, %v694
        %v698 = vperm.slane %v662, 0
        %v700 = vadd.f32 %v696, %v698
        %v701 = vpack.c.bf16 %v700, %v700
        %v702 = vld [vmem:[%s4] sm:$0xf]
        %v703 = vld [vmem:[%s4 + $0x4] sm:$0xf]
        %v704 = vld [vmem:[%s4 + $0x8] sm:$0xf]
        %v705 = vld [vmem:[%s4 + $0xc] sm:$0xf]
        %v706 = vld [vmem:[%s5] sm:$0x1]
        %v708 = vperm.slane %v706, 0
        %v714 = vunpack.c.l.b16 %v702
        %v715 = vunpack.c.l.b16 %v703
        %v716 = vunpack.c.l.b16 %v704
        %v717 = vunpack.c.l.b16 %v705
        %v718 = vpack.c.b16 %v715, %v714
        %v719 = vpack.c.b16 %v717, %v716
        %v723 = vsel %vm663, %v701, 0
        %725 = vmatpush.bf16.msra.mxu0 0
        %726 = vmatpush.bf16.msra.mxu0 0
        %727 = vmatpush.bf16.msra.mxu0 0
        %728 = vmatpush.bf16.msra.mxu0 0
        %729 = vmatpush.bf16.msra.mxu0 0
        %730 = vmatpush.bf16.msra.mxu0 0
        %731 = vmatpush.bf16.msra.mxu0 %v719
        %732 = vmatpush.bf16.msra.mxu0 %v718
        %733 = vmatmul.bf16.gmra.mxu0 %v723
        %v734 = vpop.f32.mrf.mxu0
        %v735 = vadd.f32 %v708, %v734
        %v736 = vpop.f32.mrf.mxu0
        %737 = vdwg.mxu0
        %v738 = vld [vmem:[%s6] sm:$0xf]
        %v739 = vld [vmem:[%s6 + $0x4] sm:$0xf]
        %v740 = vld [vmem:[%s6 + $0x8] sm:$0xf]
        %v741 = vld [vmem:[%s6 + $0xc] sm:$0xf]
        %v742 = vld [vmem:[%s7] sm:$0x1]
        %v744 = vperm.slane %v742, 0
        %v750 = vunpack.c.l.b16 %v738
        %v751 = vunpack.c.l.b16 %v739
        %v752 = vunpack.c.l.b16 %v740
        %v753 = vunpack.c.l.b16 %v741
        %v754 = vpack.c.b16 %v751, %v750
        %v755 = vpack.c.b16 %v753, %v752
        %758 = vmatpush.bf16.msra.mxu0 0
        %759 = vmatpush.bf16.msra.mxu0 0
        %760 = vmatpush.bf16.msra.mxu0 0
        %761 = vmatpush.bf16.msra.mxu0 0
        %762 = vmatpush.bf16.msra.mxu0 0
        %763 = vmatpush.bf16.msra.mxu0 0
        %764 = vmatpush.bf16.msra.mxu0 %v755
        %765 = vmatpush.bf16.msra.mxu0 %v754
        %766 = vmatmul.bf16.gmra.mxu0 %v723
        %v767 = vpop.f32.mrf.mxu0
        %v768 = vadd.f32 %v744, %v767
        %v769 = vpop.f32.mrf.mxu0
        %770 = vdwg.mxu0
        %v771 = vld [vmem:[#allocation5] sm:$0xf]
        %v772 = vld [vmem:[#allocation5 + $0x4] sm:$0xf]
        %v773 = vld [vmem:[#allocation5 + $0x8] sm:$0xf]
        %v774 = vld [vmem:[#allocation5 + $0xc] sm:$0xf]
        %v775 = vld [vmem:[%s9] sm:$0x1]
        %v777 = vperm.slane %v775, 0
        %v783 = vunpack.c.l.b16 %v771
        %v784 = vunpack.c.l.b16 %v772
        %v785 = vunpack.c.l.b16 %v773
        %v786 = vunpack.c.l.b16 %v774
        %v787 = vpack.c.b16 %v784, %v783
        %v788 = vpack.c.b16 %v786, %v785
        %791 = vmatpush.bf16.msra.mxu0 0
        %792 = vmatpush.bf16.msra.mxu0 0
        %793 = vmatpush.bf16.msra.mxu0 0
        %794 = vmatpush.bf16.msra.mxu0 0
        %795 = vmatpush.bf16.msra.mxu0 0
        %796 = vmatpush.bf16.msra.mxu0 0
        %797 = vmatpush.bf16.msra.mxu0 %v788
        %798 = vmatpush.bf16.msra.mxu0 %v787
        %799 = vmatmul.bf16.gmra.mxu0 %v723
        %v800 = vpop.f32.mrf.mxu0
        %v801 = vadd.f32 %v777, %v800
        %v802 = vpop.f32.mrf.mxu0
        %803 = vdwg.mxu0
        %v804 = vpack.c.bf16 %v735, %v735
        %v805 = vpack.c.bf16 %v768, %v768
        %v806 = vpack.c.bf16 %v801, %v801
        %v808 = vperm.slane %v660, 0
        %vm810 = vcmask 64512
        %v812 = vsel %vm810, %v804, 0
        %v815 = vsel %vm810, %v805, 0
        %817 = vmatpush.bf16.xpose.msra.mxu0 0
        %818 = vmatpush.bf16.xpose.msra.mxu0 0
        %819 = vmatpush.bf16.xpose.msra.mxu0 0
        %820 = vmatpush.bf16.xpose.msra.mxu0 0
        %821 = vmatpush.bf16.xpose.msra.mxu0 0
        %822 = vmatpush.bf16.xpose.msra.mxu0 0
        %823 = vmatpush.bf16.xpose.msra.mxu0 0
        %824 = vmatpush.bf16.xpose.msra.mxu0 %v815
        %825 = vmatmul.bf16.gmra.mxu0 %v812
        %v826 = vpop.f32.mrf.mxu0
        %v827 = vadd.f32 %v808, %v826
        %v828 = vpop.f32.mrf.mxu0
        %829 = vdwg.mxu0
        %v830 = vsel %vm810, %v827, -inf
        %831 = vmax.xlane.f32.xlu0 %v830
        %v832 = vpop.xlane.xlu0 %831
        %v833 = vsub.f32 %v827, %v832
        %v834 = vmul.f32 %v833, 1.442695
        %v835 = vpow.pop %v834
        %v836 = vsel %vm810, %v835, 0.0
        %837 = vadd.xlane.f32.xlu0 %v836
        %v838 = vpop.xlane.xlu0 %837
        %v839 = vpack.c.bf16 %v835, %v835
        %v841 = vsel %vm810, %v839, 0
        %vm843 = vcmask 1043456
        %v845 = vsel %vm843, %v806, 0
        %847 = vmatpush.bf16.msra.mxu0 0
        %848 = vmatpush.bf16.msra.mxu0 0
        %849 = vmatpush.bf16.msra.mxu0 0
        %850 = vmatpush.bf16.msra.mxu0 0
        %851 = vmatpush.bf16.msra.mxu0 0
        %852 = vmatpush.bf16.msra.mxu0 0
        %853 = vmatpush.bf16.msra.mxu0 0
        %854 = vmatpush.bf16.msra.mxu0 %v845
        %855 = vmatmul.bf16.gmra.mxu0 %v841
        %v856 = vpop.f32.mrf.mxu0
        %v857 = vadd.f32 0.0, %v856
        %v858 = vpop.f32.mrf.mxu0
        %859 = vdwg.mxu0
        %v860 = vrcp.pop %v838
        %v861 = vmul.f32 %v857, %v860
        %v863 = vunpack.c.l.b16 %v804
        %v864 = vpack.c.b16 %v863, %v863
        %865 = vrot.lane.b32.xlu0 %v864, 120
        %v866 = vpop.permute.xlu0 %865
        %v868 = vunpack.c.l.b16 %v805
        %v869 = vpack.c.b16 %v868, %v868
        %870 = vrot.lane.b32.xlu0 %v869, 120
        %v871 = vpop.permute.xlu0 %870
        %v873 = vsel %vm810, %v866, 0
        %v876 = vsel %vm810, %v871, 0
        %878 = vmatpush.bf16.xpose.msra.mxu0 0
        %879 = vmatpush.bf16.xpose.msra.mxu0 0
        %880 = vmatpush.bf16.xpose.msra.mxu0 0
        %881 = vmatpush.bf16.xpose.msra.mxu0 0
        %882 = vmatpush.bf16.xpose.msra.mxu0 0
        %883 = vmatpush.bf16.xpose.msra.mxu0 0
        %884 = vmatpush.bf16.xpose.msra.mxu0 0
        %885 = vmatpush.bf16.xpose.msra.mxu0 %v876
        %886 = vmatmul.bf16.gmra.mxu0 %v873
        %v887 = vpop.f32.mrf.mxu0
        %v888 = vadd.f32 %v808, %v887
        %v889 = vpop.f32.mrf.mxu0
        %890 = vdwg.mxu0
        %v891 = vsel %vm810, %v888, -inf
        %892 = vmax.xlane.f32.xlu0 %v891
        %v893 = vpop.xlane.xlu0 %892
        %v894 = vsub.f32 %v888, %v893
        %v895 = vmul.f32 %v894, 1.442695
        %v896 = vpow.pop %v895
        %v897 = vsel %vm810, %v896, 0.0
        %898 = vadd.xlane.f32.xlu0 %v897
        %v899 = vpop.xlane.xlu0 %898
        %v900 = vpack.c.bf16 %v896, %v896
        %v902 = vunpack.c.l.b16 %v806
        %v903 = vpack.c.b16 %v902, %v902
        %904 = vrot.lane.b32.xlu0 %v903, 120
        %v905 = vpop.permute.xlu0 %904
        %v907 = vsel %vm810, %v900, 0
        %v910 = vsel %vm843, %v905, 0
        %912 = vmatpush.bf16.msra.mxu0 0
        %913 = vmatpush.bf16.msra.mxu0 0
        %914 = vmatpush.bf16.msra.mxu0 0
        %915 = vmatpush.bf16.msra.mxu0 0
        %916 = vmatpush.bf16.msra.mxu0 0
        %917 = vmatpush.bf16.msra.mxu0 0
        %918 = vmatpush.bf16.msra.mxu0 0
        %919 = vmatpush.bf16.msra.mxu0 %v910
        %920 = vmatmul.bf16.gmra.mxu0 %v907
        %v921 = vpop.f32.mrf.mxu0
        %v922 = vadd.f32 0.0, %v921
        %v923 = vpop.f32.mrf.mxu0
        %924 = vdwg.mxu0
        %v925 = vrcp.pop %v899
        %v926 = vmul.f32 %v922, %v925
        %927 = vrot.lane.b32.xlu0 %v864, 112
        %v928 = vpop.permute.xlu0 %927
        %929 = vrot.lane.b32.xlu0 %v869, 112
        %v930 = vpop.permute.xlu0 %929
        %v932 = vsel %vm810, %v928, 0
        %v935 = vsel %vm810, %v930, 0
        %937 = vmatpush.bf16.xpose.msra.mxu0 0
        %938 = vmatpush.bf16.xpose.msra.mxu0 0
        %939 = vmatpush.bf16.xpose.msra.mxu0 0
        %940 = vmatpush.bf16.xpose.msra.mxu0 0
        %941 = vmatpush.bf16.xpose.msra.mxu0 0
        %942 = vmatpush.bf16.xpose.msra.mxu0 0
        %943 = vmatpush.bf16.xpose.msra.mxu0 0
        %944 = vmatpush.bf16.xpose.msra.mxu0 %v935
        %945 = vmatmul.bf16.gmra.mxu0 %v932
        %v946 = vpop.f32.mrf.mxu0
        %v947 = vadd.f32 %v808, %v946
        %v948 = vpop.f32.mrf.mxu0
        %949 = vdwg.mxu0
        %v950 = vsel %vm810, %v947, -inf
        %951 = vmax.xlane.f32.xlu0 %v950
        %v952 = vpop.xlane.xlu0 %951
        %v953 = vsub.f32 %v947, %v952
        %v954 = vmul.f32 %v953, 1.442695
        %v955 = vpow.pop %v954
        %v956 = vsel %vm810, %v955, 0.0
        %957 = vadd.xlane.f32.xlu0 %v956
        %v958 = vpop.xlane.xlu0 %957
        %v959 = vpack.c.bf16 %v955, %v955
        %960 = vrot.lane.b32.xlu0 %v903, 112
        %v961 = vpop.permute.xlu0 %960
        %v963 = vsel %vm810, %v959, 0
        %v966 = vsel %vm843, %v961, 0
        %968 = vmatpush.bf16.msra.mxu0 0
        %969 = vmatpush.bf16.msra.mxu0 0
        %970 = vmatpush.bf16.msra.mxu0 0
        %971 = vmatpush.bf16.msra.mxu0 0
        %972 = vmatpush.bf16.msra.mxu0 0
        %973 = vmatpush.bf16.msra.mxu0 0
        %974 = vmatpush.bf16.msra.mxu0 0
        %975 = vmatpush.bf16.msra.mxu0 %v966
        %976 = vmatmul.bf16.gmra.mxu0 %v963
        %v977 = vpop.f32.mrf.mxu0
        %v978 = vadd.f32 0.0, %v977
        %v979 = vpop.f32.mrf.mxu0
        %980 = vdwg.mxu0
        %v981 = vrcp.pop %v958
        %v982 = vmul.f32 %v978, %v981
        %983 = vrot.lane.b32.xlu0 %v864, 104
        %v984 = vpop.permute.xlu0 %983
        %985 = vrot.lane.b32.xlu0 %v869, 104
        %v986 = vpop.permute.xlu0 %985
        %v988 = vsel %vm810, %v984, 0
        %v991 = vsel %vm810, %v986, 0
        %993 = vmatpush.bf16.xpose.msra.mxu0 0
        %994 = vmatpush.bf16.xpose.msra.mxu0 0
        %995 = vmatpush.bf16.xpose.msra.mxu0 0
        %996 = vmatpush.bf16.xpose.msra.mxu0 0
        %997 = vmatpush.bf16.xpose.msra.mxu0 0
        %998 = vmatpush.bf16.xpose.msra.mxu0 0
        %999 = vmatpush.bf16.xpose.msra.mxu0 0
        %1000 = vmatpush.bf16.xpose.msra.mxu0 %v991
        %1001 = vmatmul.bf16.gmra.mxu0 %v988
        %v1002 = vpop.f32.mrf.mxu0
        %v1003 = vadd.f32 %v808, %v1002
        %v1004 = vpop.f32.mrf.mxu0
        %1005 = vdwg.mxu0
        %v1006 = vsel %vm810, %v1003, -inf
        %1007 = vmax.xlane.f32.xlu0 %v1006
        %v1008 = vpop.xlane.xlu0 %1007
        %v1009 = vsub.f32 %v1003, %v1008
        %v1010 = vmul.f32 %v1009, 1.442695
        %v1011 = vpow.pop %v1010
        %v1012 = vsel %vm810, %v1011, 0.0
        %1013 = vadd.xlane.f32.xlu0 %v1012
        %v1014 = vpop.xlane.xlu0 %1013
        %v1015 = vpack.c.bf16 %v1011, %v1011
        %1016 = vrot.lane.b32.xlu0 %v903, 104
        %v1017 = vpop.permute.xlu0 %1016
        %v1019 = vsel %vm810, %v1015, 0
        %v1022 = vsel %vm843, %v1017, 0
        %1024 = vmatpush.bf16.msra.mxu0 0
        %1025 = vmatpush.bf16.msra.mxu0 0
        %1026 = vmatpush.bf16.msra.mxu0 0
        %1027 = vmatpush.bf16.msra.mxu0 0
        %1028 = vmatpush.bf16.msra.mxu0 0
        %1029 = vmatpush.bf16.msra.mxu0 0
        %1030 = vmatpush.bf16.msra.mxu0 0
        %1031 = vmatpush.bf16.msra.mxu0 %v1022
        %1032 = vmatmul.bf16.gmra.mxu0 %v1019
        %v1033 = vpop.f32.mrf.mxu0
        %v1034 = vadd.f32 0.0, %v1033
        %v1035 = vpop.f32.mrf.mxu0
        %1036 = vdwg.mxu0
        %v1037 = vrcp.pop %v1014
        %v1038 = vmul.f32 %v1034, %v1037
        %1040 = vrot.lane.b32.xlu0 %v926, 8
        %v1041 = vpop.permute.xlu0 %1040
        %1044 = vrot.lane.b32.xlu0 %v982, 16
        %v1045 = vpop.permute.xlu0 %1044
        %1048 = vrot.lane.b32.xlu0 %v1038, 24
        %v1049 = vpop.permute.xlu0 %1048
        %v1051 = vsel %vm810, %v861, %v1041
        %vm1052 = vcmask 130048
        %v1053 = vsel %vm1052, %v1051, %v1045
        %vm1054 = vcmask 195584
        %v1055 = vsel %vm1054, %v1053, %v1049
        %v1056 = vpack.c.bf16 %v1055, %v1055
        %v1057 = vld [vmem:[#allocation7] sm:$0xf]
        %v1058 = vld [vmem:[#allocation7 + $0x4] sm:$0xf]
        %v1059 = vld [vmem:[#allocation7 + $0x8] sm:$0xf]
        %v1060 = vld [vmem:[#allocation7 + $0xc] sm:$0xf]
        %v1061 = vld [vmem:[%s11] sm:$0x1]
        %v1063 = vperm.slane %v1061, 0
        %v1069 = vunpack.c.l.b16 %v1057
        %v1070 = vunpack.c.l.b16 %v1058
        %v1071 = vunpack.c.l.b16 %v1059
        %v1072 = vunpack.c.l.b16 %v1060
        %v1073 = vpack.c.b16 %v1070, %v1069
        %v1074 = vpack.c.b16 %v1072, %v1071
        %v1078 = vsel %vm663, %v1056, 0
        %1080 = vmatpush.bf16.msra.mxu0 0
        %1081 = vmatpush.bf16.msra.mxu0 0
        %1082 = vmatpush.bf16.msra.mxu0 0
        %1083 = vmatpush.bf16.msra.mxu0 0
        %1084 = vmatpush.bf16.msra.mxu0 0
        %1085 = vmatpush.bf16.msra.mxu0 0
        %1086 = vmatpush.bf16.msra.mxu0 %v1074
        %1087 = vmatpush.bf16.msra.mxu0 %v1073
        %1088 = vmatmul.bf16.gmra.mxu0 %v1078
        %v1089 = vpop.f32.mrf.mxu0
        %v1090 = vadd.f32 %v1063, %v1089
        %v1091 = vpop.f32.mrf.mxu0
        %1092 = vdwg.mxu0
        %v1093 = vadd.f32 %v657, %v1090
        %v1094 = vld [vmem:[%s12] sm:$0x1]
        %v1095 = vld [vmem:[%s13] sm:$0x1]
        %v1096 = vsel %vm663, %v1093, 0.0
        %1097 = vadd.xlane.f32.xlu0 %v1096
        %v1098 = vpop.xlane.xlu0 %1097
        %v1099 = vmul.f32 %v1098, %v673
        %v1100 = vsub.f32 %v1093, %v1099
        %v1101 = vmul.f32 %v1100, %v1100
        %v1102 = vsel %vm663, %v1101, 0.0
        %1103 = vadd.xlane.f32.xlu0 %v1102
        %v1104 = vpop.xlane.xlu0 %1103
        %v1105 = vmul.f32 %v1104, %v673
        %v1106 = vadd.f32 %v1105, 1e-05
        %v1107 = vrsqrt.pop %v1106
        %v1108 = vmul.f32 %v1107, %v1106
        %v1109 = vmul.f32 %v1108, %v1107
        %v1110 = vmul.f32 0.5, %v1109
        %v1111 = vsub.f32 1.5, %v1110
        %v1112 = vmul.f32 %v1107, %v1111
        %vm1113 = vweird.f32 %v1106
        %vm1114 = vweird.f32 %v1107
        %vm1115 = vmor %vm1113, %vm1114
        %v1116 = vsel %vm1115, %v1107, %v1112
        %v1117 = vmul.f32 %v1100, %v1116
        %v1119 = vperm.slane %v1094, 0
        %v1121 = vmul.f32 %v1117, %v1119
        %v1123 = vperm.slane %v1095, 0
        %v1125 = vadd.f32 %v1121, %v1123
        %v1126 = vpack.c.bf16 %v1125, %v1125
        %v1127 = vld [vmem:[#allocation8] sm:$0xf]
        %v1128 = vld [vmem:[#allocation8 + $0x4] sm:$0xf]
        %v1129 = vld [vmem:[#allocation8 + $0x8] sm:$0xf]
        %v1130 = vld [vmem:[#allocation8 + $0xc] sm:$0xf]
        %v1131 = vld [vmem:[%s15] sm:$0x1]
        %v1133 = vperm.slane %v1131, 0
        %v1139 = vunpack.c.l.b16 %v1127
        %v1140 = vunpack.c.l.b16 %v1128
        %v1141 = vunpack.c.l.b16 %v1129
        %v1142 = vunpack.c.l.b16 %v1130
        %v1143 = vpack.c.b16 %v1140, %v1139
        %v1144 = vpack.c.b16 %v1142, %v1141
        %v1148 = vsel %vm663, %v1126, 0
        %1150 = vmatpush.bf16.msra.mxu0 0
        %1151 = vmatpush.bf16.msra.mxu0 0
        %1152 = vmatpush.bf16.msra.mxu0 0
        %1153 = vmatpush.bf16.msra.mxu0 0
        %1154 = vmatpush.bf16.msra.mxu0 0
        %1155 = vmatpush.bf16.msra.mxu0 0
        %1156 = vmatpush.bf16.msra.mxu0 %v1144
        %1157 = vmatpush.bf16.msra.mxu0 %v1143
        %1158 = vmatmul.bf16.gmra.mxu0 %v1148
        %v1159 = vpop.f32.mrf.mxu0
        %v1160 = vadd.f32 %v1133, %v1159
        %v1161 = vpop.f32.mrf.mxu0
        %1162 = vdwg.mxu0
        %v1163 = vmax.f32 %v1160, 0.0
        %v1164 = vpack.c.bf16 %v1163, %v1163
        %v1165 = vld [vmem:[%s16] sm:$0xf]
        %v1166 = vld [vmem:[%s16 + $0x4] sm:$0xf]
        %v1167 = vld [vmem:[%s16 + $0x8] sm:$0xf]
        %v1168 = vld [vmem:[%s16 + $0xc] sm:$0xf]
        %v1169 = vld [vmem:[%s16 + $0x10] sm:$0xf]
        %v1170 = vld [vmem:[%s16 + $0x14] sm:$0xf]
        %v1171 = vld [vmem:[%s16 + $0x18] sm:$0xf]
        %v1172 = vld [vmem:[%s16 + $0x1c] sm:$0xf]
        %v1173 = vld [vmem:[%s17] sm:$0x1]
        %v1175 = vperm.slane %v1173, 0
        %v1185 = vunpack.c.l.b16 %v1165
        %v1186 = vunpack.c.l.b16 %v1166
        %v1187 = vunpack.c.l.b16 %v1167
        %v1188 = vunpack.c.l.b16 %v1168
        %v1189 = vunpack.c.l.b16 %v1169
        %v1190 = vunpack.c.l.b16 %v1170
        %v1191 = vunpack.c.l.b16 %v1171
        %v1192 = vunpack.c.l.b16 %v1172
        %v1193 = vpack.c.b16 %v1186, %v1185
        %v1194 = vpack.c.b16 %v1188, %v1187
        %v1195 = vpack.c.b16 %v1190, %v1189
        %v1196 = vpack.c.b16 %v1192, %v1191
        %vm1201 = vcmask 523264
        %v1203 = vsel %vm1201, %v1164, 0
        %1205 = vmatpush.bf16.msra.mxu0 0
        %1206 = vmatpush.bf16.msra.mxu0 0
        %1207 = vmatpush.bf16.msra.mxu0 0
        %1208 = vmatpush.bf16.msra.mxu0 0
        %1209 = vmatpush.bf16.msra.mxu0 %v1196
        %1210 = vmatpush.bf16.msra.mxu0 %v1195
        %1211 = vmatpush.bf16.msra.mxu0 %v1194
        %1212 = vmatpush.bf16.msra.mxu0 %v1193
        %1213 = vmatmul.bf16.gmra.mxu0 %v1203
        %v1214 = vpop.f32.mrf.mxu0
        %v1215 = vadd.f32 %v1175, %v1214
        %v1216 = vpop.f32.mrf.mxu0
        %1217 = vdwg.mxu0
        %v1218 = vadd.f32 %v1093, %v1215
        %1219 = vst.msk [vmem:[%s651] sm:$0xff] %vm663, %v1218
        %s1220 = sand.u32 %s433, 1
        %s1221 = scalar_lea.sflag [#allocation4], %s1220
        %s1222 = sand.u32 %s433, 1
        %s1223 = smul.addr %s1222, 8
        %s1224 = scalar_lea.vmem [#allocation10], %s1223
        // Predicated region
        $region109: #{tpu_custom_call.1} parent=91 // pred_check
          %p1225 = pneg %p443
        $region110: #{tpu_custom_call.1} parent=91 // pred_check_branch
          %1227 = sbr.rel (%p1225) target = $region112
        $region111: #{tpu_custom_call.1} parent=91 // pred_region
          %1229 = vsyncadd %s1221, 0
          %s1230 = smul.addr %s37, 8
          %s1231 = scalar_lea.hbm %s18, %s1230
          %s1233 = sshll.u32 %s1224, 4
          %s1234 = int_to_ptr.vmem [resolvable:$true] %s1233
          %s1235 = sshll.u32 %s1231, 4
          %s1236 = int_to_ptr.hbm [resolvable:$true] %s1235
          %1238 = dma.vmem_to_hbm [thread:$0]  %s1234, 128, %s1236, %s1221
        $region112: #{tpu_custom_call.1} parent=91 // pred_fallthru
          _
      $region92: #{tpu_custom_call.1} parent=5 // pred_fallthru
        _
      %p1239 = scmp.le.s32.totalorder 2, %s32
      // Predicated region
      $region113: #{tpu_custom_call.1} parent=5 // pred_check
        %p1240 = pneg %p1239
      $region114: #{tpu_custom_call.1} parent=5 // pred_check_branch
        %1242 = sbr.rel (%p1240) target = $region116
      $region115: #{tpu_custom_call.1} parent=5 // pred_region
        %s1243 = ssub.s32 %s32, 2
        // Predicated region
        $region117: #{tpu_custom_call.1} parent=115 // pred_check
          %p1244 = pneg %p449
        $region118: #{tpu_custom_call.1} parent=115 // pred_check_branch
          %1246 = sbr.rel (%p1244) target = $region120
        $region119: #{tpu_custom_call.1} parent=115 // pred_region
          %s1247 = sand.u32 %s434, 1
          %s1248 = scalar_lea.sflag [#allocation4], %s1247
          %s1249 = sand.u32 %s434, 1
          %s1250 = smul.addr %s1249, 8
          %s1251 = scalar_lea.vmem [#allocation10], %s1250
          %1253 = dma.done %s1248, 128
        $region120: #{tpu_custom_call.1} parent=115 // pred_fallthru
          _
      $region116: #{tpu_custom_call.1} parent=5 // pred_fallthru
        _
    $region6: #{tpu_custom_call.1} parent=1 // loop_footer
      %s36 = sadd.s32 1, %s32
    $region7: #{tpu_custom_call.1} parent=1 // loop_footer_branch
      %31 = sbr.rel target = $region3
    $region8: #{tpu_custom_call.1} parent=1 // loop_exit
      _
    %1254 = vsyncpa [#allocation3], 1
    %s1255 = scalar_lea.sflag [#allocation3], 1
    %1256 = vsyncpa %s1255, 1
    %1257 = vsyncpa [#allocation6], 1
    %1258 = vsyncpa [#allocation9], 1
    %1259 = vsyncpa [#allocation4], 1
    %s1260 = scalar_lea.sflag [#allocation4], 1
    %1261 = vsyncpa %s1260, 1

</llo_original>
